<compile_context>
chip_gen: v7x
topology: tpu7x:2x2x1
jax: 0.10.0
libtpu: 0.0.40
codegen_flags: <defaults>
</compile_context>

<pallas_src>
import jax
import jax.numpy as jnp
from jax.experimental import pallas as pl
from jax.experimental.pallas import tpu as pltpu

_SLOPE = 0.01  # PyTorch F.leaky_relu default negative_slope


def _leaky_relu(v):
    # max(v, 0.01*v) == leaky_relu(v); 2 VALU ops (mul + max) instead of mul+cmp+select.
    return jnp.maximum(v, _SLOPE * v)


def pointnet_kernel(
    x_ref,                      # (Bt, Np, Cin) f32
    w1_ref, b1_ref,             # (Cin, P) f32, (1, P) f32   (layer 1 runs on the VPU)
    w24_ref, b2_ref,            # (P, P+G) bf16 (W2 || W4a fused), (1, P) f32
    w3_ref, b3_ref,             # (P, G)  bf16, (1, G) f32
    w4b_ref, b4_ref,            # (G, G)  bf16, (1, G) f32
    w5_ref, b5_ref,             # (G, G)  bf16, (1, G) f32
    w6_ref, b6_ref,             # (G, G)  bf16, (1, G) f32
    o_ref,                      # (1, Bt, G) f32
):
    Bt, Np, Cin = x_ref.shape
    P = w1_ref.shape[1]
    G = w3_ref.shape[1]
    M = Bt * Np

    x = x_ref[...]                                            # (Bt, Np, Cin) f32

    # --- layer 1 on the VPU: Cin is tiny, a K=Cin MXU matmul would be ~0% utilized.
    w1 = w1_ref[...]                                          # (Cin, P) f32
    pre1 = b1_ref[...]                                        # (1, P), broadcasts
    for c in range(Cin):
        pre1 = pre1 + x[:, :, c:c + 1] * w1[c:c + 1, :]
    h1 = _leaky_relu(pre1).reshape(M, P).astype(jnp.bfloat16)  # (M, P) bf16

    def dense(h_bf16, w_ref, b_ref):
        pre = jnp.dot(h_bf16, w_ref[...],
                      preferred_element_type=jnp.float32) + b_ref[...]
        return _leaky_relu(pre)                               # f32

    # --- one MXU pass over h1 feeds both consumers (layer 2 and the W4a half of c4).
    h24 = jnp.dot(h1, w24_ref[...], preferred_element_type=jnp.float32)  # (M, P+G)
    h2 = _leaky_relu(h24[:, :P] + b2_ref[...]).astype(jnp.bfloat16)      # (M, P) bf16
    h4_pre = h24[:, P:]                                                  # (M, G) f32

    h3 = dense(h2, w3_ref, b3_ref)                                       # (M, G) f32

    # global max-pool #1 over points, per batch element
    g1 = jnp.max(h3.reshape(Bt, Np, G), axis=1)                          # (Bt, G)

    # c4 on cat([out1, global_code1]): h1 @ W4a + (g1 @ W4b + b4) as a per-batch bias.
    bias4 = jnp.dot(g1.astype(jnp.bfloat16), w4b_ref[...],
                    preferred_element_type=jnp.float32) + b4_ref[...]    # (Bt, G)
    h4 = _leaky_relu(h4_pre.reshape(Bt, Np, G) + bias4.reshape(Bt, 1, G))
    h4 = h4.reshape(M, G).astype(jnp.bfloat16)                           # (M, G) bf16

    h5 = dense(h4, w5_ref, b5_ref).astype(jnp.bfloat16)                  # (M, G) bf16
    h6 = dense(h5, w6_ref, b6_ref)                                       # (M, G) f32

    # global max-pool #2 over points
    o_ref[...] = jnp.max(h6.reshape(Bt, Np, G), axis=1).reshape(1, Bt, G)


def _vmem_budget():
    """(max_rows_per_step, vmem_limit_bytes) sized per TPU generation."""
    try:
        phys = pltpu.get_tpu_info().vmem_capacity_bytes
    except Exception:
        phys = 128 * 1024 * 1024
    if phys >= 100 * 1024 * 1024:        # v5e / v6e: 128 MiB physical VMEM
        return 4096, 96 * 1024 * 1024
    return 2048, 48 * 1024 * 1024        # v7x: 64 MiB physical per TensorCore


def _step_vmem_bytes(Bt, Np, Cin, P, G):
    """Rough per-grid-step VMEM footprint (activations + I/O tiles + weights)."""
    M = Bt * Np
    act = M * (4 * (P + G)               # h24 (f32, also holds h4_pre)
               + 4 * G + 4 * G           # h3, h6 f32
               + 2 * (2 * P + 2 * G))    # h1, h2, h4, h5 bf16
    x_tile = 2 * Bt * Np * 128 * 4       # double-buffered; Cin lane-pads 3 -> 128
    out_tile = 2 * Bt * G * 4
    weights = 2 * (P * (P + G) + P * G + 3 * G * G) + 4 * (Cin * P + 2 * P + 4 * G)
    return act + x_tile + out_tile + weights


def _pick_batch_tile(B, Np, Cin, P, G, max_rows, vmem_limit):
    bt = max(1, max_rows // Np)
    if B >= 2:
        bt = min(bt, (B + 1) // 2)       # grid length >= 2 -> both v7x TCs get work
    bt = min(bt, B)
    while bt > 1 and _step_vmem_bytes(bt, Np, Cin, P, G) > int(0.8 * vmem_limit):
        bt = max(1, bt // 2)
    if _step_vmem_bytes(bt, Np, Cin, P, G) > vmem_limit:
        # TODO(synk): N-tiled two-pass structure (bf16 h1 stashed in VMEM scratch,
        # running maxes over an inner "arbitrary" N axis) for very large point counts.
        raise NotImplementedError("point count too large for the single-pass kernel")
    return bt


@jax.jit
def pointnet_forward(x, params):
    """x: (B, N, Cin) float32 -> (B, G) float32."""
    (w1, b1, w2, b2, w3, b3, w4a, w4b, b4, w5, b5, w6, b6) = params
    B, N, Cin = x.shape
    P = w1.shape[1]
    G = w3.shape[1]

    # Fuse the two consumers of h1 into one (P, P+G) bf16 weight (single MXU pass).
    w24 = jnp.concatenate([w2, w4a], axis=1)

    # Pad the point axis to a multiple of 8 sublanes by replicating a real point
    # (duplicates do not change the max-pools).
    if N % 8:
        pad = 8 - (N % 8)
        x = jnp.concatenate(
            [x, jnp.broadcast_to(x[:, :1, :], (B, pad, Cin))], axis=1)
    Np = x.shape[1]

    max_rows, vmem_limit = _vmem_budget()
    Bt = _pick_batch_tile(B, Np, Cin, P, G, max_rows, vmem_limit)
    nsteps = pl.cdiv(B, Bt)
    Bp = nsteps * Bt
    if Bp > B:
        # Pad the batch so Bt divides it (duplicate rows, slice the output afterwards).
        x = jnp.concatenate(
            [x, jnp.broadcast_to(x[:1], (Bp - B, Np, Cin))], axis=0)

    def _const(shape):
        # Constant index_map -> same block every grid step; Pallas skips the re-DMA.
        return pl.BlockSpec(shape, lambda i, _n=len(shape): (0,) * _n)

    in_specs = [
        pl.BlockSpec((Bt, Np, Cin), lambda i: (i, 0, 0)),
        _const(w1.shape), _const(b1.shape),
        _const(w24.shape), _const(b2.shape),
        _const(w3.shape), _const(b3.shape),
        _const(w4b.shape), _const(b4.shape),
        _const(w5.shape), _const(b5.shape),
        _const(w6.shape), _const(b6.shape),
    ]

    out = pl.pallas_call(
        pointnet_kernel,
        out_shape=jax.ShapeDtypeStruct((nsteps, Bt, G), jnp.float32),
        grid=(nsteps,),
        in_specs=in_specs,
        out_specs=pl.BlockSpec((1, Bt, G), lambda i: (i, 0, 0)),
        compiler_params=pltpu.CompilerParams(
            dimension_semantics=("parallel",),
            vmem_limit_bytes=vmem_limit),
    )(x, w1, b1, w24, b2, w3, b3, w4b, b4, w5, b5, w6, b6)

    return out.reshape(Bp, G)[:B]


def init_params(key, input_features, point_code_dim, global_feature_dim):
    """Deterministic synthetic parameters.  Weights stored as (in, out) so the kernel
    does x @ W (equivalent to torch Conv1d(in, out, 1) with weight (out, in, 1)).
    MXU-facing weights (layers 2-6) are bf16; layer-1 weight and biases stay f32."""
    P, G, Cin = point_code_dim, global_feature_dim, input_features
    shapes = [
        ((Cin, P), (1, P)),      # c1
        ((P, P), (1, P)),        # c2
        ((P, G), (1, G)),        # c3
        ((P + G, G), (1, G)),    # c4 (split into w4a/w4b for the concat)
        ((G, G), (1, G)),        # c5
        ((G, G), (1, G)),        # c6
    ]
    keys = jax.random.split(key, 2 * len(shapes))
    raw = []
    for i, (ws, bs) in enumerate(shapes):
        scale = 1.0 / jnp.sqrt(jnp.float32(ws[0]))
        w = jax.random.uniform(keys[2 * i], ws, jnp.float32, -scale, scale)
        b = jax.random.uniform(keys[2 * i + 1], bs, jnp.float32, -scale, scale)
        raw.append((w, b))

    (w1, b1), (w2, b2), (w3, b3), (w4, b4), (w5, b5), (w6, b6) = raw
    w4a, w4b = w4[:P, :], w4[P:, :]
    bf16 = jnp.bfloat16
    return (w1, b1,
            w2.astype(bf16), b2,
            w3.astype(bf16), b3,
            w4a.astype(bf16), w4b.astype(bf16), b4,
            w5.astype(bf16), b5,
            w6.astype(bf16), b6)


def pointnet_reference(x, params):
    """Pure-JAX reference mirroring the PyTorch forward (same bf16 dot precision)."""
    (w1, b1, w2, b2, w3, b3, w4a, w4b, b4, w5, b5, w6, b6) = params

    def dot(h, w):
        return jnp.einsum('bnk,kq->bnq', h.astype(w.dtype), w,
                          preferred_element_type=jnp.float32)

    h1 = _leaky_relu(dot(x, w1) + b1)
    h2 = _leaky_relu(dot(h1, w2) + b2)
    h3 = _leaky_relu(dot(h2, w3) + b3)
    g1 = jnp.max(h3, axis=1, keepdims=True)                  # (B, 1, G)
    h4 = _leaky_relu(dot(h1, w4a) + dot(g1, w4b) + b4)
    h5 = _leaky_relu(dot(h4, w5) + b5)
    h6 = _leaky_relu(dot(h5, w6) + b6)
    return jnp.max(h6, axis=1)                               # (B, G)


if __name__ == "__main__":
    # small-but-consistent shapes
    B, N, Cin = 2, 16, 3
    POINT_CODE_DIM = 128
    GLOBAL_FEATURE_DIM = 256

    key = jax.random.PRNGKey(0)
    kx, kp = jax.random.split(key)
    x = jax.random.normal(kx, (B, N, Cin), dtype=jnp.float32)
    params = init_params(kp, Cin, POINT_CODE_DIM, GLOBAL_FEATURE_DIM)

    out = jax.block_until_ready(pointnet_forward(x, params))
    ref = pointnet_reference(x, params)

    assert out.shape == (B, GLOBAL_FEATURE_DIM), out.shape
    max_err = float(jnp.max(jnp.abs(out - ref)))
    assert jnp.allclose(out, ref, atol=1e-2, rtol=1e-2), max_err

    print("KERNEL_OK")
</pallas_src>

<mosaic_0001>
module attributes {stable_mosaic.version = 11 : i64} {
  func.func @pointnet_kernel(%arg0: i32, %arg1: memref<1x16x3xf32, #tpu.memory_space<vmem>>, %arg2: memref<3x128xf32, #tpu.memory_space<vmem>>, %arg3: memref<1x128xf32, #tpu.memory_space<vmem>>, %arg4: memref<128x384xbf16, #tpu.memory_space<vmem>>, %arg5: memref<1x128xf32, #tpu.memory_space<vmem>>, %arg6: memref<128x256xbf16, #tpu.memory_space<vmem>>, %arg7: memref<1x256xf32, #tpu.memory_space<vmem>>, %arg8: memref<256x256xbf16, #tpu.memory_space<vmem>>, %arg9: memref<1x256xf32, #tpu.memory_space<vmem>>, %arg10: memref<256x256xbf16, #tpu.memory_space<vmem>>, %arg11: memref<1x256xf32, #tpu.memory_space<vmem>>, %arg12: memref<256x256xbf16, #tpu.memory_space<vmem>>, %arg13: memref<1x256xf32, #tpu.memory_space<vmem>>, %arg14: memref<1x1x256xf32, #tpu.memory_space<vmem>>) attributes {dimension_semantics = [#tpu.dimension_semantics<parallel>], iteration_bounds = array<i64: 2>, scalar_prefetch = 0 : i64, scratch_operands = 0 : i64, tpu.core_type = #tpu.core_type<tc>, window_params = [{transform_indices = @transform_0, window_bounds = array<i64: 1, 16, 3>}, {pipeline_mode = #tpu.pipeline_mode<synchronous>, transform_indices = @transform_1, window_bounds = array<i64: 3, 128>}, {pipeline_mode = #tpu.pipeline_mode<synchronous>, transform_indices = @transform_2, window_bounds = array<i64: 1, 128>}, {pipeline_mode = #tpu.pipeline_mode<synchronous>, transform_indices = @transform_3, window_bounds = array<i64: 128, 384>}, {pipeline_mode = #tpu.pipeline_mode<synchronous>, transform_indices = @transform_4, window_bounds = array<i64: 1, 128>}, {pipeline_mode = #tpu.pipeline_mode<synchronous>, transform_indices = @transform_5, window_bounds = array<i64: 128, 256>}, {pipeline_mode = #tpu.pipeline_mode<synchronous>, transform_indices = @transform_6, window_bounds = array<i64: 1, 256>}, {pipeline_mode = #tpu.pipeline_mode<synchronous>, transform_indices = @transform_7, window_bounds = array<i64: 256, 256>}, {pipeline_mode = #tpu.pipeline_mode<synchronous>, transform_indices = @transform_8, window_bounds = array<i64: 1, 256>}, {pipeline_mode = #tpu.pipeline_mode<synchronous>, transform_indices = @transform_9, window_bounds = array<i64: 256, 256>}, {pipeline_mode = #tpu.pipeline_mode<synchronous>, transform_indices = @transform_10, window_bounds = array<i64: 1, 256>}, {pipeline_mode = #tpu.pipeline_mode<synchronous>, transform_indices = @transform_11, window_bounds = array<i64: 256, 256>}, {pipeline_mode = #tpu.pipeline_mode<synchronous>, transform_indices = @transform_12, window_bounds = array<i64: 1, 256>}, {transform_indices = @transform_13, window_bounds = array<i64: 1, 1, 256>}]} {
    %c0 = arith.constant 0 : index
    %c0_0 = arith.constant 0 : index
    %c0_1 = arith.constant 0 : index
    %0 = vector.load %arg1[%c0, %c0_0, %c0_1] : memref<1x16x3xf32, #tpu.memory_space<vmem>>, vector<1x16x3xf32>
    %c0_2 = arith.constant 0 : index
    %c0_3 = arith.constant 0 : index
    %1 = vector.load %arg2[%c0_2, %c0_3] : memref<3x128xf32, #tpu.memory_space<vmem>>, vector<3x128xf32>
    %c0_4 = arith.constant 0 : index
    %c0_5 = arith.constant 0 : index
    %2 = vector.load %arg3[%c0_4, %c0_5] : memref<1x128xf32, #tpu.memory_space<vmem>>, vector<1x128xf32>
    %3 = vector.extract_strided_slice %0 {offsets = [0, 0, 0], sizes = [1, 16, 1], strides = [1, 1, 1]} : vector<1x16x3xf32> to vector<1x16x1xf32>
    %4 = vector.extract_strided_slice %1 {offsets = [0, 0], sizes = [1, 128], strides = [1, 1]} : vector<3x128xf32> to vector<1x128xf32>
    %5 = vector.shape_cast %4 : vector<1x128xf32> to vector<1x1x128xf32>
    %6 = vector.broadcast %3 : vector<1x16x1xf32> to vector<1x16x128xf32>
    %7 = vector.broadcast %5 : vector<1x1x128xf32> to vector<1x16x128xf32>
    %8 = arith.mulf %6, %7 : vector<1x16x128xf32>
    %9 = vector.shape_cast %2 : vector<1x128xf32> to vector<1x1x128xf32>
    %10 = vector.broadcast %9 : vector<1x1x128xf32> to vector<1x16x128xf32>
    %11 = arith.addf %10, %8 : vector<1x16x128xf32>
    %12 = vector.extract_strided_slice %0 {offsets = [0, 0, 1], sizes = [1, 16, 1], strides = [1, 1, 1]} : vector<1x16x3xf32> to vector<1x16x1xf32>
    %13 = vector.extract_strided_slice %1 {offsets = [1, 0], sizes = [1, 128], strides = [1, 1]} : vector<3x128xf32> to vector<1x128xf32>
    %14 = vector.shape_cast %13 : vector<1x128xf32> to vector<1x1x128xf32>
    %15 = vector.broadcast %12 : vector<1x16x1xf32> to vector<1x16x128xf32>
    %16 = vector.broadcast %14 : vector<1x1x128xf32> to vector<1x16x128xf32>
    %17 = arith.mulf %15, %16 : vector<1x16x128xf32>
    %18 = arith.addf %11, %17 : vector<1x16x128xf32>
    %19 = vector.extract_strided_slice %0 {offsets = [0, 0, 2], sizes = [1, 16, 1], strides = [1, 1, 1]} : vector<1x16x3xf32> to vector<1x16x1xf32>
    %20 = vector.extract_strided_slice %1 {offsets = [2, 0], sizes = [1, 128], strides = [1, 1]} : vector<3x128xf32> to vector<1x128xf32>
    %21 = vector.shape_cast %20 : vector<1x128xf32> to vector<1x1x128xf32>
    %22 = vector.broadcast %19 : vector<1x16x1xf32> to vector<1x16x128xf32>
    %23 = vector.broadcast %21 : vector<1x1x128xf32> to vector<1x16x128xf32>
    %24 = arith.mulf %22, %23 : vector<1x16x128xf32>
    %25 = arith.addf %18, %24 : vector<1x16x128xf32>
    %cst = arith.constant 0.00999999977 : f32
    %26 = vector.broadcast %cst : f32 to vector<1x16x128xf32>
    %27 = arith.mulf %26, %25 : vector<1x16x128xf32>
    %28 = arith.maximumf %25, %27 : vector<1x16x128xf32>
    %29 = vector.shape_cast %28 : vector<1x16x128xf32> to vector<16x128xf32>
    %30 = arith.truncf %29 : vector<16x128xf32> to vector<16x128xbf16>
    %c0_6 = arith.constant 0 : index
    %c0_7 = arith.constant 0 : index
    %31 = vector.load %arg4[%c0_6, %c0_7] : memref<128x384xbf16, #tpu.memory_space<vmem>>, vector<128x384xbf16>
    %cst_8 = arith.constant dense<0.000000e+00> : vector<16x384xf32>
    %32 = tpu.matmul %30, %31, %cst_8 {dimension_numbers = #tpu.dot_dimension_numbers<[1], [0], [0], [1], [0, 0, 1, 1], [], []>} : vector<16x128xbf16>, vector<128x384xbf16>, vector<16x384xf32> -> vector<16x384xf32>
    %33 = vector.extract_strided_slice %32 {offsets = [0, 0], sizes = [16, 128], strides = [1, 1]} : vector<16x384xf32> to vector<16x128xf32>
    %c0_9 = arith.constant 0 : index
    %c0_10 = arith.constant 0 : index
    %34 = vector.load %arg5[%c0_9, %c0_10] : memref<1x128xf32, #tpu.memory_space<vmem>>, vector<1x128xf32>
    %35 = vector.broadcast %34 : vector<1x128xf32> to vector<16x128xf32>
    %36 = arith.addf %33, %35 : vector<16x128xf32>
    %cst_11 = arith.constant 0.00999999977 : f32
    %37 = vector.broadcast %cst_11 : f32 to vector<16x128xf32>
    %38 = arith.mulf %37, %36 : vector<16x128xf32>
    %39 = arith.maximumf %36, %38 : vector<16x128xf32>
    %40 = arith.truncf %39 : vector<16x128xf32> to vector<16x128xbf16>
    %41 = vector.extract_strided_slice %32 {offsets = [0, 128], sizes = [16, 256], strides = [1, 1]} : vector<16x384xf32> to vector<16x256xf32>
    %c0_12 = arith.constant 0 : index
    %c0_13 = arith.constant 0 : index
    %42 = vector.load %arg6[%c0_12, %c0_13] : memref<128x256xbf16, #tpu.memory_space<vmem>>, vector<128x256xbf16>
    %cst_14 = arith.constant dense<0.000000e+00> : vector<16x256xf32>
    %43 = tpu.matmul %40, %42, %cst_14 {dimension_numbers = #tpu.dot_dimension_numbers<[1], [0], [0], [1], [0, 0, 1, 1], [], []>} : vector<16x128xbf16>, vector<128x256xbf16>, vector<16x256xf32> -> vector<16x256xf32>
    %c0_15 = arith.constant 0 : index
    %c0_16 = arith.constant 0 : index
    %44 = vector.load %arg7[%c0_15, %c0_16] : memref<1x256xf32, #tpu.memory_space<vmem>>, vector<1x256xf32>
    %45 = vector.broadcast %44 : vector<1x256xf32> to vector<16x256xf32>
    %46 = arith.addf %43, %45 : vector<16x256xf32>
    %cst_17 = arith.constant 0.00999999977 : f32
    %47 = vector.broadcast %cst_17 : f32 to vector<16x256xf32>
    %48 = arith.mulf %47, %46 : vector<16x256xf32>
    %49 = arith.maximumf %46, %48 : vector<16x256xf32>
    %50 = vector.shape_cast %49 : vector<16x256xf32> to vector<1x16x256xf32>
    %cst_18 = arith.constant dense<0xFF800000> : vector<1x256xf32>
    %51 = vector.multi_reduction <maximumf>, %50, %cst_18 [1] : vector<1x16x256xf32> to vector<1x256xf32>
    %52 = arith.truncf %51 : vector<1x256xf32> to vector<1x256xbf16>
    %c0_19 = arith.constant 0 : index
    %c0_20 = arith.constant 0 : index
    %53 = vector.load %arg8[%c0_19, %c0_20] : memref<256x256xbf16, #tpu.memory_space<vmem>>, vector<256x256xbf16>
    %cst_21 = arith.constant dense<0.000000e+00> : vector<1x256xf32>
    %54 = tpu.matmul %52, %53, %cst_21 {dimension_numbers = #tpu.dot_dimension_numbers<[1], [0], [0], [1], [0, 0, 1, 1], [], []>} : vector<1x256xbf16>, vector<256x256xbf16>, vector<1x256xf32> -> vector<1x256xf32>
    %c0_22 = arith.constant 0 : index
    %c0_23 = arith.constant 0 : index
    %55 = vector.load %arg9[%c0_22, %c0_23] : memref<1x256xf32, #tpu.memory_space<vmem>>, vector<1x256xf32>
    %56 = arith.addf %54, %55 : vector<1x256xf32>
    %57 = vector.shape_cast %41 : vector<16x256xf32> to vector<1x16x256xf32>
    %58 = vector.shape_cast %56 : vector<1x256xf32> to vector<1x1x256xf32>
    %59 = vector.broadcast %58 : vector<1x1x256xf32> to vector<1x16x256xf32>
    %60 = arith.addf %57, %59 : vector<1x16x256xf32>
    %cst_24 = arith.constant 0.00999999977 : f32
    %61 = vector.broadcast %cst_24 : f32 to vector<1x16x256xf32>
    %62 = arith.mulf %61, %60 : vector<1x16x256xf32>
    %63 = arith.maximumf %60, %62 : vector<1x16x256xf32>
    %64 = vector.shape_cast %63 : vector<1x16x256xf32> to vector<16x256xf32>
    %65 = arith.truncf %64 : vector<16x256xf32> to vector<16x256xbf16>
    %c0_25 = arith.constant 0 : index
    %c0_26 = arith.constant 0 : index
    %66 = vector.load %arg10[%c0_25, %c0_26] : memref<256x256xbf16, #tpu.memory_space<vmem>>, vector<256x256xbf16>
    %cst_27 = arith.constant dense<0.000000e+00> : vector<16x256xf32>
    %67 = tpu.matmul %65, %66, %cst_27 {dimension_numbers = #tpu.dot_dimension_numbers<[1], [0], [0], [1], [0, 0, 1, 1], [], []>} : vector<16x256xbf16>, vector<256x256xbf16>, vector<16x256xf32> -> vector<16x256xf32>
    %c0_28 = arith.constant 0 : index
    %c0_29 = arith.constant 0 : index
    %68 = vector.load %arg11[%c0_28, %c0_29] : memref<1x256xf32, #tpu.memory_space<vmem>>, vector<1x256xf32>
    %69 = vector.broadcast %68 : vector<1x256xf32> to vector<16x256xf32>
    %70 = arith.addf %67, %69 : vector<16x256xf32>
    %cst_30 = arith.constant 0.00999999977 : f32
    %71 = vector.broadcast %cst_30 : f32 to vector<16x256xf32>
    %72 = arith.mulf %71, %70 : vector<16x256xf32>
    %73 = arith.maximumf %70, %72 : vector<16x256xf32>
    %74 = arith.truncf %73 : vector<16x256xf32> to vector<16x256xbf16>
    %c0_31 = arith.constant 0 : index
    %c0_32 = arith.constant 0 : index
    %75 = vector.load %arg12[%c0_31, %c0_32] : memref<256x256xbf16, #tpu.memory_space<vmem>>, vector<256x256xbf16>
    %cst_33 = arith.constant dense<0.000000e+00> : vector<16x256xf32>
    %76 = tpu.matmul %74, %75, %cst_33 {dimension_numbers = #tpu.dot_dimension_numbers<[1], [0], [0], [1], [0, 0, 1, 1], [], []>} : vector<16x256xbf16>, vector<256x256xbf16>, vector<16x256xf32> -> vector<16x256xf32>
    %c0_34 = arith.constant 0 : index
    %c0_35 = arith.constant 0 : index
    %77 = vector.load %arg13[%c0_34, %c0_35] : memref<1x256xf32, #tpu.memory_space<vmem>>, vector<1x256xf32>
    %78 = vector.broadcast %77 : vector<1x256xf32> to vector<16x256xf32>
    %79 = arith.addf %76, %78 : vector<16x256xf32>
    %cst_36 = arith.constant 0.00999999977 : f32
    %80 = vector.broadcast %cst_36 : f32 to vector<16x256xf32>
    %81 = arith.mulf %80, %79 : vector<16x256xf32>
    %82 = arith.maximumf %79, %81 : vector<16x256xf32>
    %83 = vector.shape_cast %82 : vector<16x256xf32> to vector<1x16x256xf32>
    %cst_37 = arith.constant dense<0xFF800000> : vector<1x256xf32>
    %84 = vector.multi_reduction <maximumf>, %83, %cst_37 [1] : vector<1x16x256xf32> to vector<1x256xf32>
    %85 = vector.shape_cast %84 : vector<1x256xf32> to vector<1x1x256xf32>
    %c0_38 = arith.constant 0 : index
    %c0_39 = arith.constant 0 : index
    %c0_40 = arith.constant 0 : index
    %86 = vector.load %arg14[%c0_38, %c0_39, %c0_40] : memref<1x1x256xf32, #tpu.memory_space<vmem>>, vector<1x1x256xf32>
    tpu.vector_store %arg14[%c0_38, %c0_39, %c0_40], %85 {strides = array<i32>} : memref<1x1x256xf32, #tpu.memory_space<vmem>>, vector<1x1x256xf32>,
    return
  }
  func.func @transform_0(%arg0: i32) -> (i32, i32, i32) {
    %c0_i32 = arith.constant 0 : i32
    %c0_i32_0 = arith.constant 0 : i32
    %c0_i32_1 = arith.constant 0 : i32
    return %arg0, %c0_i32, %c0_i32_0 : i32, i32, i32
  }
  func.func @transform_1(%arg0: i32) -> (i32, i32) {
    %c0_i32 = arith.constant 0 : i32
    %c0_i32_0 = arith.constant 0 : i32
    %c0_i32_1 = arith.constant 0 : i32
    return %c0_i32, %c0_i32_0 : i32, i32
  }
  func.func @transform_2(%arg0: i32) -> (i32, i32) {
    %c0_i32 = arith.constant 0 : i32
    %c0_i32_0 = arith.constant 0 : i32
    %c0_i32_1 = arith.constant 0 : i32
    return %c0_i32, %c0_i32_0 : i32, i32
  }
  func.func @transform_3(%arg0: i32) -> (i32, i32) {
    %c0_i32 = arith.constant 0 : i32
    %c0_i32_0 = arith.constant 0 : i32
    %c0_i32_1 = arith.constant 0 : i32
    return %c0_i32, %c0_i32_0 : i32, i32
  }
  func.func @transform_4(%arg0: i32) -> (i32, i32) {
    %c0_i32 = arith.constant 0 : i32
    %c0_i32_0 = arith.constant 0 : i32
    %c0_i32_1 = arith.constant 0 : i32
    return %c0_i32, %c0_i32_0 : i32, i32
  }
  func.func @transform_5(%arg0: i32) -> (i32, i32) {
    %c0_i32 = arith.constant 0 : i32
    %c0_i32_0 = arith.constant 0 : i32
    %c0_i32_1 = arith.constant 0 : i32
    return %c0_i32, %c0_i32_0 : i32, i32
  }
  func.func @transform_6(%arg0: i32) -> (i32, i32) {
    %c0_i32 = arith.constant 0 : i32
    %c0_i32_0 = arith.constant 0 : i32
    %c0_i32_1 = arith.constant 0 : i32
    return %c0_i32, %c0_i32_0 : i32, i32
  }
  func.func @transform_7(%arg0: i32) -> (i32, i32) {
    %c0_i32 = arith.constant 0 : i32
    %c0_i32_0 = arith.constant 0 : i32
    %c0_i32_1 = arith.constant 0 : i32
    return %c0_i32, %c0_i32_0 : i32, i32
  }
  func.func @transform_8(%arg0: i32) -> (i32, i32) {
    %c0_i32 = arith.constant 0 : i32
    %c0_i32_0 = arith.constant 0 : i32
    %c0_i32_1 = arith.constant 0 : i32
    return %c0_i32, %c0_i32_0 : i32, i32
  }
  func.func @transform_9(%arg0: i32) -> (i32, i32) {
    %c0_i32 = arith.constant 0 : i32
    %c0_i32_0 = arith.constant 0 : i32
    %c0_i32_1 = arith.constant 0 : i32
    return %c0_i32, %c0_i32_0 : i32, i32
  }
  func.func @transform_10(%arg0: i32) -> (i32, i32) {
    %c0_i32 = arith.constant 0 : i32
    %c0_i32_0 = arith.constant 0 : i32
    %c0_i32_1 = arith.constant 0 : i32
    return %c0_i32, %c0_i32_0 : i32, i32
  }
  func.func @transform_11(%arg0: i32) -> (i32, i32) {
    %c0_i32 = arith.constant 0 : i32
    %c0_i32_0 = arith.constant 0 : i32
    %c0_i32_1 = arith.constant 0 : i32
    return %c0_i32, %c0_i32_0 : i32, i32
  }
  func.func @transform_12(%arg0: i32) -> (i32, i32) {
    %c0_i32 = arith.constant 0 : i32
    %c0_i32_0 = arith.constant 0 : i32
    %c0_i32_1 = arith.constant 0 : i32
    return %c0_i32, %c0_i32_0 : i32, i32
  }
  func.func @transform_13(%arg0: i32) -> (i32, i32, i32) {
    %c0_i32 = arith.constant 0 : i32
    %c0_i32_0 = arith.constant 0 : i32
    %c0_i32_1 = arith.constant 0 : i32
    return %arg0, %c0_i32, %c0_i32_0 : i32, i32, i32
  }
}

</mosaic_0001>

<llo_original>
// kernel: pointnet_forward.1
$region0: #{pointnet_forward.1}
  #allocation0 [shape = 'u32[]', space=smem, size = 0x4, offset = 0x4, fixed_abs, tag = 'smem constant byte address 0x4 - core index']
  #allocation1 [shape = 'u32[144,128]{1,0:T(1,128)}', space=vmem, size = 0x12000, scoped, tag = 'internal scratch']
  %s0 = inlined_call_operand.hbm [shape: f32[2,16,3], index: 0, kind: input, shape index: {}]
  %s1 = inlined_call_operand.hbm [shape: f32[3,128], index: 1, kind: input, shape index: {}]
  %s2 = inlined_call_operand.hbm [shape: f32[1,128], index: 2, kind: input, shape index: {}]
  %s3 = inlined_call_operand.hbm [shape: bf16[128,384], index: 3, kind: input, shape index: {}]
  %s4 = inlined_call_operand.hbm [shape: f32[1,128], index: 4, kind: input, shape index: {}]
  %s5 = inlined_call_operand.hbm [shape: bf16[128,256], index: 5, kind: input, shape index: {}]
  %s6 = inlined_call_operand.hbm [shape: f32[1,256], index: 6, kind: input, shape index: {}]
  %s7 = inlined_call_operand.hbm [shape: bf16[256,256], index: 7, kind: input, shape index: {}]
  %s8 = inlined_call_operand.hbm [shape: f32[1,256], index: 8, kind: input, shape index: {}]
  %s9 = inlined_call_operand.hbm [shape: bf16[256,256], index: 9, kind: input, shape index: {}]
  %s10 = inlined_call_operand.hbm [shape: f32[1,256], index: 10, kind: input, shape index: {}]
  %s11 = inlined_call_operand.hbm [shape: bf16[256,256], index: 11, kind: input, shape index: {}]
  %s12 = inlined_call_operand.hbm [shape: f32[1,256], index: 12, kind: input, shape index: {}]
  %s13 = inlined_call_operand.hbm [shape: f32[2,1,256], index: 13, kind: output, shape index: {}]
  %s14 = sld [smem:[#allocation0]]
  $region137: #{pointnet_forward.1} parent=0
    _
  %s16 = ssub.s32 1, %s14
  %s17 = scalar_select 0, %s16, %s14
  $region1: #{pointnet_forward.1} parent=0
    #allocation2 [shape = 'u8[16384]{0}', space=vmem, size = 0x4000, scoped, tag = 'input window, operand 0']
    #allocation3 [shape = 's32[2]{0}', space=sflag, size = 0x8, scoped, tag = 'scoped memory for pointnet_forward.1']
    #allocation4 [shape = 's32[2]{0}', space=sflag, size = 0x8, scoped, tag = 'scoped memory for pointnet_forward.1']
    #allocation5 [shape = 'u8[2048]{0}', space=vmem, size = 0x800, scoped, tag = 'input window, operand 1, single buffered']
    #allocation6 [shape = 's32[1]{0}', space=sflag, size = 0x4, scoped, tag = 'scoped memory for pointnet_forward.1']
    #allocation7 [shape = 'u8[512]{0}', space=vmem, size = 0x400, scoped, tag = 'input window, operand 2, single buffered']
    #allocation8 [shape = 'u8[98304]{0}', space=vmem, size = 0x18000, scoped, tag = 'input window, operand 3, single buffered']
    #allocation9 [shape = 's32[1]{0}', space=sflag, size = 0x4, scoped, tag = 'scoped memory for pointnet_forward.1']
    #allocation10 [shape = 'u8[512]{0}', space=vmem, size = 0x400, scoped, tag = 'input window, operand 4, single buffered']
    #allocation11 [shape = 'u8[65536]{0}', space=vmem, size = 0x10000, scoped, tag = 'input window, operand 5, single buffered']
    #allocation12 [shape = 's32[1]{0}', space=sflag, size = 0x4, scoped, tag = 'scoped memory for pointnet_forward.1']
    #allocation13 [shape = 'u8[1024]{0}', space=vmem, size = 0x400, scoped, tag = 'input window, operand 6, single buffered']
    #allocation14 [shape = 'u8[131072]{0}', space=vmem, size = 0x20000, scoped, tag = 'input window, operand 7, single buffered']
    #allocation15 [shape = 's32[1]{0}', space=sflag, size = 0x4, scoped, tag = 'scoped memory for pointnet_forward.1']
    #allocation16 [shape = 'u8[1024]{0}', space=vmem, size = 0x400, scoped, tag = 'input window, operand 8, single buffered']
    #allocation17 [shape = 'u8[131072]{0}', space=vmem, size = 0x20000, scoped, tag = 'input window, operand 9, single buffered']
    #allocation18 [shape = 's32[1]{0}', space=sflag, size = 0x4, scoped, tag = 'scoped memory for pointnet_forward.1']
    #allocation19 [shape = 'u8[1024]{0}', space=vmem, size = 0x400, scoped, tag = 'input window, operand 10, single buffered']
    #allocation20 [shape = 'u8[131072]{0}', space=vmem, size = 0x20000, scoped, tag = 'input window, operand 11, single buffered']
    #allocation21 [shape = 's32[1]{0}', space=sflag, size = 0x4, scoped, tag = 'scoped memory for pointnet_forward.1']
    #allocation22 [shape = 'u8[1024]{0}', space=vmem, size = 0x400, scoped, tag = 'input window, operand 12, single buffered']
    #allocation23 [shape = 'u8[2048]{0}', space=vmem, size = 0x800, scoped, tag = 'output window, operand 0']
    %18 = vsyncpa [#allocation3], 0
    %s19 = scalar_lea.sflag [#allocation3], 1
    %20 = vsyncpa %s19, 0
    %21 = vsyncpa [#allocation6], 0
    %22 = vsyncpa [#allocation9], 0
    %23 = vsyncpa [#allocation12], 0
    %24 = vsyncpa [#allocation15], 0
    %25 = vsyncpa [#allocation18], 0
    %26 = vsyncpa [#allocation21], 0
    %27 = vsyncpa [#allocation4], 0
    %s28 = scalar_lea.sflag [#allocation4], 1
    %29 = vsyncpa %s28, 0
    loop: start=0, step=1, limit=4
    $region2: #{pointnet_forward.1} parent=1 // loop_pre_header
      _
    $region3: #{pointnet_forward.1} parent=1 // loop_header
      %s31 = sphi 0, %s35
      %p32 = scmp.ge.s32.totalorder %s31, 4
      %s41 = sphi 0, %s43
      %s44 = sphi 0, %s41
      %s45 = sphi 0, %s44
      %s61 = sphi 0, %s45
      %s65 = sphi 0, %s65
      %s67 = sphi 0, %s65
      %s68 = sphi 0, %s67
      %s82 = sphi 0, %s68
      %s86 = sphi 0, %s86
      %s88 = sphi 0, %s86
      %s89 = sphi 0, %s88
      %s103 = sphi 0, %s89
      %s107 = sphi 0, %s107
      %s109 = sphi 0, %s107
      %s110 = sphi 0, %s109
      %s124 = sphi 0, %s110
      %s128 = sphi 0, %s128
      %s130 = sphi 0, %s128
      %s131 = sphi 0, %s130
      %s145 = sphi 0, %s131
      %s149 = sphi 0, %s149
      %s151 = sphi 0, %s149
      %s152 = sphi 0, %s151
      %s166 = sphi 0, %s152
      %s170 = sphi 0, %s170
      %s172 = sphi 0, %s170
      %s173 = sphi 0, %s172
      %s187 = sphi 0, %s173
      %s191 = sphi 0, %s191
      %s193 = sphi 0, %s191
      %s194 = sphi 0, %s193
      %s208 = sphi 0, %s194
      %s212 = sphi 0, %s212
      %s214 = sphi 0, %s212
      %s215 = sphi 0, %s214
      %s229 = sphi 0, %s215
      %s233 = sphi 0, %s233
      %s235 = sphi 0, %s233
      %s236 = sphi 0, %s235
      %s250 = sphi 0, %s236
      %s254 = sphi 0, %s254
      %s256 = sphi 0, %s254
      %s257 = sphi 0, %s256
      %s271 = sphi 0, %s257
      %s275 = sphi 0, %s275
      %s277 = sphi 0, %s275
      %s278 = sphi 0, %s277
      %s292 = sphi 0, %s278
      %s296 = sphi 0, %s296
      %s298 = sphi 0, %s296
      %s299 = sphi 0, %s298
      %s313 = sphi 0, %s299
      %s319 = sphi 0, %s321
      %s322 = sphi 0, %s319
      %s323 = sphi 0, %s322
      %s339 = sphi 0, %s323
    $region4: #{pointnet_forward.1} parent=1 // loop_header_branch
      %34 = sbr.rel (%p32) target = $region8
    $region5: #{pointnet_forward.1} parent=1 // loop_body
      %s36 = ssub.s32 %s31, 1
      %s37 = ssub.s32 %s31, 2
      %s38 = sadd.s32 %s31, 1
      %s39 = ssub.s32 %s31, %s38
      %p40 = scmp.eq.s32.totalorder %s39, 0
      %s42 = sadd.s32 %s41, 1
      %s43 = scalar_select %p40, %s41, %s42
      %p46 = pneg %p40
      %p47 = scmp.eq.s32.totalorder %s31, 1
      %p48 = por %p46, %p47
      %p49 = scmp.ne.s32.totalorder %s41, %s44
      %p50 = scmp.eq.s32.totalorder %s31, 0
      %p51 = por %p49, %p50
      %p52 = scmp.ne.s32.totalorder %s41, %s44
      %p53 = scmp.eq.s32.totalorder %s36, 1
      %p54 = por %p52, %p53
      %p55 = scmp.ne.s32.totalorder %s44, %s45
      %p56 = scmp.eq.s32.totalorder %s36, 0
      %p57 = por %p55, %p56
      %p58 = scmp.ne.s32.totalorder %s44, %s45
      %p59 = scmp.eq.s32.totalorder %s37, 1
      %p60 = por %p58, %p59
      %p62 = scmp.ne.s32.totalorder %s45, %s61
      %p63 = scmp.eq.s32.totalorder %s37, 0
      %p64 = por %p62, %p63
      %s66 = sadd.s32 %s65, 1
      %p69 = scmp.eq.s32.totalorder %s31, 1
      %p70 = scmp.ne.s32.totalorder %s65, %s67
      %p71 = scmp.eq.s32.totalorder %s31, 0
      %p72 = por %p70, %p71
      %p73 = scmp.ne.s32.totalorder %s65, %s67
      %p74 = scmp.eq.s32.totalorder %s36, 1
      %p75 = por %p73, %p74
      %p76 = scmp.ne.s32.totalorder %s67, %s68
      %p77 = scmp.eq.s32.totalorder %s36, 0
      %p78 = por %p76, %p77
      %p79 = scmp.ne.s32.totalorder %s67, %s68
      %p80 = scmp.eq.s32.totalorder %s37, 1
      %p81 = por %p79, %p80
      %p83 = scmp.ne.s32.totalorder %s68, %s82
      %p84 = scmp.eq.s32.totalorder %s37, 0
      %p85 = por %p83, %p84
      %s87 = sadd.s32 %s86, 1
      %p90 = scmp.eq.s32.totalorder %s31, 1
      %p91 = scmp.ne.s32.totalorder %s86, %s88
      %p92 = scmp.eq.s32.totalorder %s31, 0
      %p93 = por %p91, %p92
      %p94 = scmp.ne.s32.totalorder %s86, %s88
      %p95 = scmp.eq.s32.totalorder %s36, 1
      %p96 = por %p94, %p95
      %p97 = scmp.ne.s32.totalorder %s88, %s89
      %p98 = scmp.eq.s32.totalorder %s36, 0
      %p99 = por %p97, %p98
      %p100 = scmp.ne.s32.totalorder %s88, %s89
      %p101 = scmp.eq.s32.totalorder %s37, 1
      %p102 = por %p100, %p101
      %p104 = scmp.ne.s32.totalorder %s89, %s103
      %p105 = scmp.eq.s32.totalorder %s37, 0
      %p106 = por %p104, %p105
      %s108 = sadd.s32 %s107, 1
      %p111 = scmp.eq.s32.totalorder %s31, 1
      %p112 = scmp.ne.s32.totalorder %s107, %s109
      %p113 = scmp.eq.s32.totalorder %s31, 0
      %p114 = por %p112, %p113
      %p115 = scmp.ne.s32.totalorder %s107, %s109
      %p116 = scmp.eq.s32.totalorder %s36, 1
      %p117 = por %p115, %p116
      %p118 = scmp.ne.s32.totalorder %s109, %s110
      %p119 = scmp.eq.s32.totalorder %s36, 0
      %p120 = por %p118, %p119
      %p121 = scmp.ne.s32.totalorder %s109, %s110
      %p122 = scmp.eq.s32.totalorder %s37, 1
      %p123 = por %p121, %p122
      %p125 = scmp.ne.s32.totalorder %s110, %s124
      %p126 = scmp.eq.s32.totalorder %s37, 0
      %p127 = por %p125, %p126
      %s129 = sadd.s32 %s128, 1
      %p132 = scmp.eq.s32.totalorder %s31, 1
      %p133 = scmp.ne.s32.totalorder %s128, %s130
      %p134 = scmp.eq.s32.totalorder %s31, 0
      %p135 = por %p133, %p134
      %p136 = scmp.ne.s32.totalorder %s128, %s130
      %p137 = scmp.eq.s32.totalorder %s36, 1
      %p138 = por %p136, %p137
      %p139 = scmp.ne.s32.totalorder %s130, %s131
      %p140 = scmp.eq.s32.totalorder %s36, 0
      %p141 = por %p139, %p140
      %p142 = scmp.ne.s32.totalorder %s130, %s131
      %p143 = scmp.eq.s32.totalorder %s37, 1
      %p144 = por %p142, %p143
      %p146 = scmp.ne.s32.totalorder %s131, %s145
      %p147 = scmp.eq.s32.totalorder %s37, 0
      %p148 = por %p146, %p147
      %s150 = sadd.s32 %s149, 1
      %p153 = scmp.eq.s32.totalorder %s31, 1
      %p154 = scmp.ne.s32.totalorder %s149, %s151
      %p155 = scmp.eq.s32.totalorder %s31, 0
      %p156 = por %p154, %p155
      %p157 = scmp.ne.s32.totalorder %s149, %s151
      %p158 = scmp.eq.s32.totalorder %s36, 1
      %p159 = por %p157, %p158
      %p160 = scmp.ne.s32.totalorder %s151, %s152
      %p161 = scmp.eq.s32.totalorder %s36, 0
      %p162 = por %p160, %p161
      %p163 = scmp.ne.s32.totalorder %s151, %s152
      %p164 = scmp.eq.s32.totalorder %s37, 1
      %p165 = por %p163, %p164
      %p167 = scmp.ne.s32.totalorder %s152, %s166
      %p168 = scmp.eq.s32.totalorder %s37, 0
      %p169 = por %p167, %p168
      %s171 = sadd.s32 %s170, 1
      %p174 = scmp.eq.s32.totalorder %s31, 1
      %p175 = scmp.ne.s32.totalorder %s170, %s172
      %p176 = scmp.eq.s32.totalorder %s31, 0
      %p177 = por %p175, %p176
      %p178 = scmp.ne.s32.totalorder %s170, %s172
      %p179 = scmp.eq.s32.totalorder %s36, 1
      %p180 = por %p178, %p179
      %p181 = scmp.ne.s32.totalorder %s172, %s173
      %p182 = scmp.eq.s32.totalorder %s36, 0
      %p183 = por %p181, %p182
      %p184 = scmp.ne.s32.totalorder %s172, %s173
      %p185 = scmp.eq.s32.totalorder %s37, 1
      %p186 = por %p184, %p185
      %p188 = scmp.ne.s32.totalorder %s173, %s187
      %p189 = scmp.eq.s32.totalorder %s37, 0
      %p190 = por %p188, %p189
      %s192 = sadd.s32 %s191, 1
      %p195 = scmp.eq.s32.totalorder %s31, 1
      %p196 = scmp.ne.s32.totalorder %s191, %s193
      %p197 = scmp.eq.s32.totalorder %s31, 0
      %p198 = por %p196, %p197
      %p199 = scmp.ne.s32.totalorder %s191, %s193
      %p200 = scmp.eq.s32.totalorder %s36, 1
      %p201 = por %p199, %p200
      %p202 = scmp.ne.s32.totalorder %s193, %s194
      %p203 = scmp.eq.s32.totalorder %s36, 0
      %p204 = por %p202, %p203
      %p205 = scmp.ne.s32.totalorder %s193, %s194
      %p206 = scmp.eq.s32.totalorder %s37, 1
      %p207 = por %p205, %p206
      %p209 = scmp.ne.s32.totalorder %s194, %s208
      %p210 = scmp.eq.s32.totalorder %s37, 0
      %p211 = por %p209, %p210
      %s213 = sadd.s32 %s212, 1
      %p216 = scmp.eq.s32.totalorder %s31, 1
      %p217 = scmp.ne.s32.totalorder %s212, %s214
      %p218 = scmp.eq.s32.totalorder %s31, 0
      %p219 = por %p217, %p218
      %p220 = scmp.ne.s32.totalorder %s212, %s214
      %p221 = scmp.eq.s32.totalorder %s36, 1
      %p222 = por %p220, %p221
      %p223 = scmp.ne.s32.totalorder %s214, %s215
      %p224 = scmp.eq.s32.totalorder %s36, 0
      %p225 = por %p223, %p224
      %p226 = scmp.ne.s32.totalorder %s214, %s215
      %p227 = scmp.eq.s32.totalorder %s37, 1
      %p228 = por %p226, %p227
      %p230 = scmp.ne.s32.totalorder %s215, %s229
      %p231 = scmp.eq.s32.totalorder %s37, 0
      %p232 = por %p230, %p231
      %s234 = sadd.s32 %s233, 1
      %p237 = scmp.eq.s32.totalorder %s31, 1
      %p238 = scmp.ne.s32.totalorder %s233, %s235
      %p239 = scmp.eq.s32.totalorder %s31, 0
      %p240 = por %p238, %p239
      %p241 = scmp.ne.s32.totalorder %s233, %s235
      %p242 = scmp.eq.s32.totalorder %s36, 1
      %p243 = por %p241, %p242
      %p244 = scmp.ne.s32.totalorder %s235, %s236
      %p245 = scmp.eq.s32.totalorder %s36, 0
      %p246 = por %p244, %p245
      %p247 = scmp.ne.s32.totalorder %s235, %s236
      %p248 = scmp.eq.s32.totalorder %s37, 1
      %p249 = por %p247, %p248
      %p251 = scmp.ne.s32.totalorder %s236, %s250
      %p252 = scmp.eq.s32.totalorder %s37, 0
      %p253 = por %p251, %p252
      %s255 = sadd.s32 %s254, 1
      %p258 = scmp.eq.s32.totalorder %s31, 1
      %p259 = scmp.ne.s32.totalorder %s254, %s256
      %p260 = scmp.eq.s32.totalorder %s31, 0
      %p261 = por %p259, %p260
      %p262 = scmp.ne.s32.totalorder %s254, %s256
      %p263 = scmp.eq.s32.totalorder %s36, 1
      %p264 = por %p262, %p263
      %p265 = scmp.ne.s32.totalorder %s256, %s257
      %p266 = scmp.eq.s32.totalorder %s36, 0
      %p267 = por %p265, %p266
      %p268 = scmp.ne.s32.totalorder %s256, %s257
      %p269 = scmp.eq.s32.totalorder %s37, 1
      %p270 = por %p268, %p269
      %p272 = scmp.ne.s32.totalorder %s257, %s271
      %p273 = scmp.eq.s32.totalorder %s37, 0
      %p274 = por %p272, %p273
      %s276 = sadd.s32 %s275, 1
      %p279 = scmp.eq.s32.totalorder %s31, 1
      %p280 = scmp.ne.s32.totalorder %s275, %s277
      %p281 = scmp.eq.s32.totalorder %s31, 0
      %p282 = por %p280, %p281
      %p283 = scmp.ne.s32.totalorder %s275, %s277
      %p284 = scmp.eq.s32.totalorder %s36, 1
      %p285 = por %p283, %p284
      %p286 = scmp.ne.s32.totalorder %s277, %s278
      %p287 = scmp.eq.s32.totalorder %s36, 0
      %p288 = por %p286, %p287
      %p289 = scmp.ne.s32.totalorder %s277, %s278
      %p290 = scmp.eq.s32.totalorder %s37, 1
      %p291 = por %p289, %p290
      %p293 = scmp.ne.s32.totalorder %s278, %s292
      %p294 = scmp.eq.s32.totalorder %s37, 0
      %p295 = por %p293, %p294
      %s297 = sadd.s32 %s296, 1
      %p300 = scmp.eq.s32.totalorder %s31, 1
      %p301 = scmp.ne.s32.totalorder %s296, %s298
      %p302 = scmp.eq.s32.totalorder %s31, 0
      %p303 = por %p301, %p302
      %p304 = scmp.ne.s32.totalorder %s296, %s298
      %p305 = scmp.eq.s32.totalorder %s36, 1
      %p306 = por %p304, %p305
      %p307 = scmp.ne.s32.totalorder %s298, %s299
      %p308 = scmp.eq.s32.totalorder %s36, 0
      %p309 = por %p307, %p308
      %p310 = scmp.ne.s32.totalorder %s298, %s299
      %p311 = scmp.eq.s32.totalorder %s37, 1
      %p312 = por %p310, %p311
      %p314 = scmp.ne.s32.totalorder %s299, %s313
      %p315 = scmp.eq.s32.totalorder %s37, 0
      %p316 = por %p314, %p315
      %s317 = ssub.s32 %s31, %s38
      %p318 = scmp.eq.s32.totalorder %s317, 0
      %s320 = sadd.s32 %s319, 1
      %s321 = scalar_select %p318, %s319, %s320
      %p324 = pneg %p318
      %p325 = scmp.eq.s32.totalorder %s31, 1
      %p326 = por %p324, %p325
      %p327 = scmp.ne.s32.totalorder %s319, %s322
      %p328 = scmp.eq.s32.totalorder %s31, 0
      %p329 = por %p327, %p328
      %p330 = scmp.ne.s32.totalorder %s319, %s322
      %p331 = scmp.eq.s32.totalorder %s36, 1
      %p332 = por %p330, %p331
      %p333 = scmp.ne.s32.totalorder %s322, %s323
      %p334 = scmp.eq.s32.totalorder %s36, 0
      %p335 = por %p333, %p334
      %p336 = scmp.ne.s32.totalorder %s322, %s323
      %p337 = scmp.eq.s32.totalorder %s37, 1
      %p338 = por %p336, %p337
      %p340 = scmp.ne.s32.totalorder %s323, %s339
      %p341 = scmp.eq.s32.totalorder %s37, 0
      %p342 = por %p340, %p341
      %p343 = scmp.le.s32.totalorder 1, %s31
      %p344 = scmp.lt.s32.totalorder %s31, 3
      %p345 = pnand %p343, %p344
      %p346 = pneg %p345
      // Predicated region
      $region9: #{pointnet_forward.1} parent=5 // pred_check
        _
      $region10: #{pointnet_forward.1} parent=5 // pred_check_branch
        %348 = sbr.rel (%p345) target = $region12
      $region11: #{pointnet_forward.1} parent=5 // pred_region
        %s349 = ssub.s32 %s31, 1
        // Predicated region
        $region13: #{pointnet_forward.1} parent=11 // pred_check
          %p350 = pneg %p78
        $region14: #{pointnet_forward.1} parent=11 // pred_check_branch
          %352 = sbr.rel (%p350) target = $region16
        $region15: #{pointnet_forward.1} parent=11 // pred_region
          %s354 = ssub.s32 64, 64
          %355 = vsyncadd [#allocation6], %s354
          %s357 = sshll.u32 [#allocation5], 4
          %s358 = int_to_ptr.vmem [resolvable:$true] %s357
          %360 = dma.hbm_to_vmem [thread:$0]  %s1, 64, %s358, [#allocation6]
        $region16: #{pointnet_forward.1} parent=11 // pred_fallthru
          _
        // Predicated region
        $region17: #{pointnet_forward.1} parent=11 // pred_check
          %p361 = pneg %p99
        $region18: #{pointnet_forward.1} parent=11 // pred_check_branch
          %363 = sbr.rel (%p361) target = $region20
        $region19: #{pointnet_forward.1} parent=11 // pred_region
          %s365 = ssub.s32 16, 16
          %366 = vsyncadd [#allocation6], %s365
          %s368 = sshll.u32 [#allocation7], 4
          %s369 = int_to_ptr.vmem [resolvable:$true] %s368
          %371 = dma.hbm_to_vmem [thread:$0]  %s2, 16, %s369, [#allocation6]
        $region20: #{pointnet_forward.1} parent=11 // pred_fallthru
          _
        // Predicated region
        $region21: #{pointnet_forward.1} parent=11 // pred_check
          %p372 = pneg %p120
        $region22: #{pointnet_forward.1} parent=11 // pred_check_branch
          %374 = sbr.rel (%p372) target = $region24
        $region23: #{pointnet_forward.1} parent=11 // pred_region
          %s376 = ssub.s32 3072, 3072
          %377 = vsyncadd [#allocation9], %s376
          %s378 = sshll.u32 [#allocation8], 4
          %s379 = int_to_ptr.vmem [resolvable:$true] %s378
          %384 = dma.hbm_to_vmem [thread:$0]  %s3, 3072, %s379, [#allocation9], 192, 192, 12
        $region24: #{pointnet_forward.1} parent=11 // pred_fallthru
          _
        // Predicated region
        $region25: #{pointnet_forward.1} parent=11 // pred_check
          %p385 = pneg %p141
        $region26: #{pointnet_forward.1} parent=11 // pred_check_branch
          %387 = sbr.rel (%p385) target = $region28
        $region27: #{pointnet_forward.1} parent=11 // pred_region
          %s389 = ssub.s32 16, 16
          %390 = vsyncadd [#allocation9], %s389
          %s392 = sshll.u32 [#allocation10], 4
          %s393 = int_to_ptr.vmem [resolvable:$true] %s392
          %395 = dma.hbm_to_vmem [thread:$0]  %s4, 16, %s393, [#allocation9]
        $region28: #{pointnet_forward.1} parent=11 // pred_fallthru
          _
        // Predicated region
        $region29: #{pointnet_forward.1} parent=11 // pred_check
          %p396 = pneg %p162
        $region30: #{pointnet_forward.1} parent=11 // pred_check_branch
          %398 = sbr.rel (%p396) target = $region32
        $region31: #{pointnet_forward.1} parent=11 // pred_region
          %s400 = ssub.s32 2048, 2048
          %401 = vsyncadd [#allocation12], %s400
          %s402 = sshll.u32 [#allocation11], 4
          %s403 = int_to_ptr.vmem [resolvable:$true] %s402
          %408 = dma.hbm_to_vmem [thread:$0]  %s5, 2048, %s403, [#allocation12], 128, 128, 8
        $region32: #{pointnet_forward.1} parent=11 // pred_fallthru
          _
        // Predicated region
        $region33: #{pointnet_forward.1} parent=11 // pred_check
          %p409 = pneg %p183
        $region34: #{pointnet_forward.1} parent=11 // pred_check_branch
          %411 = sbr.rel (%p409) target = $region36
        $region35: #{pointnet_forward.1} parent=11 // pred_region
          %s413 = ssub.s32 32, 32
          %414 = vsyncadd [#allocation12], %s413
          %s416 = sshll.u32 [#allocation13], 4
          %s417 = int_to_ptr.vmem [resolvable:$true] %s416
          %419 = dma.hbm_to_vmem [thread:$0]  %s6, 32, %s417, [#allocation12]
        $region36: #{pointnet_forward.1} parent=11 // pred_fallthru
          _
        // Predicated region
        $region37: #{pointnet_forward.1} parent=11 // pred_check
          %p420 = pneg %p204
        $region38: #{pointnet_forward.1} parent=11 // pred_check_branch
          %422 = sbr.rel (%p420) target = $region40
        $region39: #{pointnet_forward.1} parent=11 // pred_region
          %s424 = ssub.s32 4096, 4096
          %425 = vsyncadd [#allocation15], %s424
          %s426 = sshll.u32 [#allocation14], 4
          %s427 = int_to_ptr.vmem [resolvable:$true] %s426
          %432 = dma.hbm_to_vmem [thread:$0]  %s7, 4096, %s427, [#allocation15], 128, 128, 8
        $region40: #{pointnet_forward.1} parent=11 // pred_fallthru
          _
        // Predicated region
        $region41: #{pointnet_forward.1} parent=11 // pred_check
          %p433 = pneg %p225
        $region42: #{pointnet_forward.1} parent=11 // pred_check_branch
          %435 = sbr.rel (%p433) target = $region44
        $region43: #{pointnet_forward.1} parent=11 // pred_region
          %s437 = ssub.s32 32, 32
          %438 = vsyncadd [#allocation15], %s437
          %s440 = sshll.u32 [#allocation16], 4
          %s441 = int_to_ptr.vmem [resolvable:$true] %s440
          %443 = dma.hbm_to_vmem [thread:$0]  %s8, 32, %s441, [#allocation15]
        $region44: #{pointnet_forward.1} parent=11 // pred_fallthru
          _
        // Predicated region
        $region45: #{pointnet_forward.1} parent=11 // pred_check
          %p444 = pneg %p246
        $region46: #{pointnet_forward.1} parent=11 // pred_check_branch
          %446 = sbr.rel (%p444) target = $region48
        $region47: #{pointnet_forward.1} parent=11 // pred_region
          %s448 = ssub.s32 4096, 4096
          %449 = vsyncadd [#allocation18], %s448
          %s450 = sshll.u32 [#allocation17], 4
          %s451 = int_to_ptr.vmem [resolvable:$true] %s450
          %456 = dma.hbm_to_vmem [thread:$0]  %s9, 4096, %s451, [#allocation18], 128, 128, 8
        $region48: #{pointnet_forward.1} parent=11 // pred_fallthru
          _
        // Predicated region
        $region49: #{pointnet_forward.1} parent=11 // pred_check
          %p457 = pneg %p267
        $region50: #{pointnet_forward.1} parent=11 // pred_check_branch
          %459 = sbr.rel (%p457) target = $region52
        $region51: #{pointnet_forward.1} parent=11 // pred_region
          %s461 = ssub.s32 32, 32
          %462 = vsyncadd [#allocation18], %s461
          %s464 = sshll.u32 [#allocation19], 4
          %s465 = int_to_ptr.vmem [resolvable:$true] %s464
          %467 = dma.hbm_to_vmem [thread:$0]  %s10, 32, %s465, [#allocation18]
        $region52: #{pointnet_forward.1} parent=11 // pred_fallthru
          _
        // Predicated region
        $region53: #{pointnet_forward.1} parent=11 // pred_check
          %p468 = pneg %p288
        $region54: #{pointnet_forward.1} parent=11 // pred_check_branch
          %470 = sbr.rel (%p468) target = $region56
        $region55: #{pointnet_forward.1} parent=11 // pred_region
          %s472 = ssub.s32 4096, 4096
          %473 = vsyncadd [#allocation21], %s472
          %s474 = sshll.u32 [#allocation20], 4
          %s475 = int_to_ptr.vmem [resolvable:$true] %s474
          %480 = dma.hbm_to_vmem [thread:$0]  %s11, 4096, %s475, [#allocation21], 128, 128, 8
        $region56: #{pointnet_forward.1} parent=11 // pred_fallthru
          _
        // Predicated region
        $region57: #{pointnet_forward.1} parent=11 // pred_check
          %p481 = pneg %p309
        $region58: #{pointnet_forward.1} parent=11 // pred_check_branch
          %483 = sbr.rel (%p481) target = $region60
        $region59: #{pointnet_forward.1} parent=11 // pred_region
          %s485 = ssub.s32 32, 32
          %486 = vsyncadd [#allocation21], %s485
          %s488 = sshll.u32 [#allocation22], 4
          %s489 = int_to_ptr.vmem [resolvable:$true] %s488
          %491 = dma.hbm_to_vmem [thread:$0]  %s12, 32, %s489, [#allocation21]
        $region60: #{pointnet_forward.1} parent=11 // pred_fallthru
          _
      $region12: #{pointnet_forward.1} parent=5 // pred_fallthru
        _
      %p492 = scmp.lt.s32.totalorder %s31, 2
      // Predicated region
      $region61: #{pointnet_forward.1} parent=5 // pred_check
        %p493 = pneg %p492
      $region62: #{pointnet_forward.1} parent=5 // pred_check_branch
        %495 = sbr.rel (%p493) target = $region64
      $region63: #{pointnet_forward.1} parent=5 // pred_region
        // Predicated region
        $region65: #{pointnet_forward.1} parent=63 // pred_check
          %p496 = pneg %p51
        $region66: #{pointnet_forward.1} parent=63 // pred_check_branch
          %498 = sbr.rel (%p496) target = $region68
        $region67: #{pointnet_forward.1} parent=63 // pred_region
          %s499 = sand.u32 %s41, 1
          %s500 = scalar_lea.sflag [#allocation3], %s499
          %s501 = sand.u32 %s41, 1
          %s502 = smul.addr %s501, 16
          %s503 = scalar_lea.vmem [#allocation2], %s502
          %s505 = ssub.s32 256, 256
          %506 = vsyncadd %s500, %s505
          %s507 = smul.addr %s31, 2
          %s508 = smul.addr %s507, 128
          %s509 = scalar_lea.hbm %s0, %s508
          %s510 = sshll.u32 %s503, 4
          %s511 = int_to_ptr.vmem [resolvable:$true] %s510
          %516 = dma.hbm_to_vmem [thread:$0]  %s509, 256, %s511, %s500, 128, 128, 8
        $region68: #{pointnet_forward.1} parent=63 // pred_fallthru
          _
      $region64: #{pointnet_forward.1} parent=5 // pred_fallthru
        _
      %p517 = scmp.le.s32.totalorder 1, %s31
      %p518 = scmp.lt.s32.totalorder %s31, 3
      %p519 = pnand %p517, %p518
      %p520 = pneg %p519
      // Predicated region
      $region69: #{pointnet_forward.1} parent=5 // pred_check
        _
      $region70: #{pointnet_forward.1} parent=5 // pred_check_branch
        %522 = sbr.rel (%p519) target = $region72
      $region71: #{pointnet_forward.1} parent=5 // pred_region
        %s523 = ssub.s32 %s31, 1
        %s524 = sand.u32 %s44, 1
        %s525 = scalar_lea.sflag [#allocation3], %s524
        %s526 = sand.u32 %s44, 1
        %s527 = smul.addr %s526, 16
        %s528 = scalar_lea.vmem [#allocation2], %s527
        // Predicated region
        $region73: #{pointnet_forward.1} parent=71 // pred_check
          %p529 = pneg %p57
        $region74: #{pointnet_forward.1} parent=71 // pred_check_branch
          %531 = sbr.rel (%p529) target = $region76
        $region75: #{pointnet_forward.1} parent=71 // pred_region
          %532 = dma.done %s525, 256
        $region76: #{pointnet_forward.1} parent=71 // pred_fallthru
          _
        // Predicated region
        $region77: #{pointnet_forward.1} parent=71 // pred_check
          %p533 = pneg %p78
        $region78: #{pointnet_forward.1} parent=71 // pred_check_branch
          %535 = sbr.rel (%p533) target = $region80
        $region79: #{pointnet_forward.1} parent=71 // pred_region
          %536 = dma.done [#allocation6], 64
        $region80: #{pointnet_forward.1} parent=71 // pred_fallthru
          _
        // Predicated region
        $region81: #{pointnet_forward.1} parent=71 // pred_check
          %p537 = pneg %p99
        $region82: #{pointnet_forward.1} parent=71 // pred_check_branch
          %539 = sbr.rel (%p537) target = $region84
        $region83: #{pointnet_forward.1} parent=71 // pred_region
          %540 = dma.done [#allocation6], 16
        $region84: #{pointnet_forward.1} parent=71 // pred_fallthru
          _
        // Predicated region
        $region85: #{pointnet_forward.1} parent=71 // pred_check
          %p541 = pneg %p120
        $region86: #{pointnet_forward.1} parent=71 // pred_check_branch
          %543 = sbr.rel (%p541) target = $region88
        $region87: #{pointnet_forward.1} parent=71 // pred_region
          %544 = dma.done [#allocation9], 3072
        $region88: #{pointnet_forward.1} parent=71 // pred_fallthru
          _
        // Predicated region
        $region89: #{pointnet_forward.1} parent=71 // pred_check
          %p545 = pneg %p141
        $region90: #{pointnet_forward.1} parent=71 // pred_check_branch
          %547 = sbr.rel (%p545) target = $region92
        $region91: #{pointnet_forward.1} parent=71 // pred_region
          %548 = dma.done [#allocation9], 16
        $region92: #{pointnet_forward.1} parent=71 // pred_fallthru
          _
        // Predicated region
        $region93: #{pointnet_forward.1} parent=71 // pred_check
          %p549 = pneg %p162
        $region94: #{pointnet_forward.1} parent=71 // pred_check_branch
          %551 = sbr.rel (%p549) target = $region96
        $region95: #{pointnet_forward.1} parent=71 // pred_region
          %552 = dma.done [#allocation12], 2048
        $region96: #{pointnet_forward.1} parent=71 // pred_fallthru
          _
        // Predicated region
        $region97: #{pointnet_forward.1} parent=71 // pred_check
          %p553 = pneg %p183
        $region98: #{pointnet_forward.1} parent=71 // pred_check_branch
          %555 = sbr.rel (%p553) target = $region100
        $region99: #{pointnet_forward.1} parent=71 // pred_region
          %556 = dma.done [#allocation12], 32
        $region100: #{pointnet_forward.1} parent=71 // pred_fallthru
          _
        // Predicated region
        $region101: #{pointnet_forward.1} parent=71 // pred_check
          %p557 = pneg %p204
        $region102: #{pointnet_forward.1} parent=71 // pred_check_branch
          %559 = sbr.rel (%p557) target = $region104
        $region103: #{pointnet_forward.1} parent=71 // pred_region
          %560 = dma.done [#allocation15], 4096
        $region104: #{pointnet_forward.1} parent=71 // pred_fallthru
          _
        // Predicated region
        $region105: #{pointnet_forward.1} parent=71 // pred_check
          %p561 = pneg %p225
        $region106: #{pointnet_forward.1} parent=71 // pred_check_branch
          %563 = sbr.rel (%p561) target = $region108
        $region107: #{pointnet_forward.1} parent=71 // pred_region
          %564 = dma.done [#allocation15], 32
        $region108: #{pointnet_forward.1} parent=71 // pred_fallthru
          _
        // Predicated region
        $region109: #{pointnet_forward.1} parent=71 // pred_check
          %p565 = pneg %p246
        $region110: #{pointnet_forward.1} parent=71 // pred_check_branch
          %567 = sbr.rel (%p565) target = $region112
        $region111: #{pointnet_forward.1} parent=71 // pred_region
          %568 = dma.done [#allocation18], 4096
        $region112: #{pointnet_forward.1} parent=71 // pred_fallthru
          _
        // Predicated region
        $region113: #{pointnet_forward.1} parent=71 // pred_check
          %p569 = pneg %p267
        $region114: #{pointnet_forward.1} parent=71 // pred_check_branch
          %571 = sbr.rel (%p569) target = $region116
        $region115: #{pointnet_forward.1} parent=71 // pred_region
          %572 = dma.done [#allocation18], 32
        $region116: #{pointnet_forward.1} parent=71 // pred_fallthru
          _
        // Predicated region
        $region117: #{pointnet_forward.1} parent=71 // pred_check
          %p573 = pneg %p288
        $region118: #{pointnet_forward.1} parent=71 // pred_check_branch
          %575 = sbr.rel (%p573) target = $region120
        $region119: #{pointnet_forward.1} parent=71 // pred_region
          %576 = dma.done [#allocation21], 4096
        $region120: #{pointnet_forward.1} parent=71 // pred_fallthru
          _
        // Predicated region
        $region121: #{pointnet_forward.1} parent=71 // pred_check
          %p577 = pneg %p309
        $region122: #{pointnet_forward.1} parent=71 // pred_check_branch
          %579 = sbr.rel (%p577) target = $region124
        $region123: #{pointnet_forward.1} parent=71 // pred_region
          %580 = dma.done [#allocation21], 32
        $region124: #{pointnet_forward.1} parent=71 // pred_fallthru
          _
        %s581 = sand.u32 %s44, 1
        %s582 = scalar_lea.sflag [#allocation3], %s581
        %s583 = sand.u32 %s44, 1
        %s584 = smul.addr %s583, 16
        %s585 = scalar_lea.vmem [#allocation2], %s584
        %p586 = pneg %p57
        %p587 = pneg %p54
        %p588 = pneg %p78
        %p589 = pneg %p75
        %p590 = pneg %p99
        %p591 = pneg %p96
        %p592 = pneg %p120
        %p593 = pneg %p117
        %p594 = pneg %p141
        %p595 = pneg %p138
        %p596 = pneg %p162
        %p597 = pneg %p159
        %p598 = pneg %p183
        %p599 = pneg %p180
        %p600 = pneg %p204
        %p601 = pneg %p201
        %p602 = pneg %p225
        %p603 = pneg %p222
        %p604 = pneg %p246
        %p605 = pneg %p243
        %p606 = pneg %p267
        %p607 = pneg %p264
        %p608 = pneg %p288
        %p609 = pneg %p285
        %p610 = pneg %p309
        %p611 = pneg %p306
        %p612 = pneg %p335
        %p613 = pneg %p332
        %s614 = sand.u32 %s322, 1
        %s615 = scalar_lea.sflag [#allocation4], %s614
        %s616 = sand.u32 %s322, 1
        %s617 = smul.addr %s616, 2
        %s618 = scalar_lea.vmem [#allocation23], %s617
        %v620 = vld [vmem:[%s528] sm:$0xff]
        %v621 = vld [vmem:[%s528 + $0x8] sm:$0xff]
        %v622 = vld [vmem:[#allocation5] sm:$0x7]
        %v623 = vld [vmem:[#allocation7] sm:$0x1]
        %625 = vset.pattern.permute.xlu0 0
        %626 = vperm.xlu0 %625, %v620
        %v627 = vpop.permute.xlu0 %626
        %630 = vset.pattern.permute.xlu0 0
        %631 = vperm.xlu0 %630, %v621
        %v632 = vpop.permute.xlu0 %631
        %v634 = vlaneseq
        %v635 = vshrl.u32 %v634, 7
        %v636 = vsub.s32 0, %v635
        %v637 = vrot.slane %v622, %v636
        %v638 = vmul.f32 %v627, %v637
        %v639 = vmul.f32 %v632, %v637
        %v641 = vlaneseq
        %v642 = vshrl.u32 %v641, 7
        %v643 = vsub.s32 0, %v642
        %v644 = vrot.slane %v623, %v643
        %v646 = vadd.f32 %v644, %v638
        %v647 = vadd.f32 %v644, %v639
        %648 = vset.pattern.permute.xlu0 1
        %649 = vperm.xlu0 %648, %v620
        %v650 = vpop.permute.xlu0 %649
        %652 = vset.pattern.permute.xlu0 1
        %653 = vperm.xlu0 %652, %v621
        %v654 = vpop.permute.xlu0 %653
        %v656 = vlaneseq
        %v657 = vshrl.u32 %v656, 7
        %v658 = vsub.s32 1, %v657
        %v659 = vrot.slane %v622, %v658
        %v660 = vmul.f32 %v650, %v659
        %v661 = vmul.f32 %v654, %v659
        %v662 = vadd.f32 %v646, %v660
        %v663 = vadd.f32 %v647, %v661
        %664 = vset.pattern.permute.xlu0 2
        %665 = vperm.xlu0 %664, %v620
        %v666 = vpop.permute.xlu0 %665
        %668 = vset.pattern.permute.xlu0 2
        %669 = vperm.xlu0 %668, %v621
        %v670 = vpop.permute.xlu0 %669
        %v672 = vlaneseq
        %v673 = vshrl.u32 %v672, 7
        %v674 = vsub.s32 2, %v673
        %v675 = vrot.slane %v622, %v674
        %v676 = vmul.f32 %v666, %v675
        %v677 = vmul.f32 %v670, %v675
        %v678 = vadd.f32 %v662, %v676
        %v679 = vadd.f32 %v663, %v677
        %v680 = vmul.f32 %v678, 0.01
        %v681 = vmul.f32 %v679, 0.01
        %v682 = vmax.f32 %v678, %v680
        %v683 = vmax.f32 %v679, %v681
        %v684 = vpack.c.bf16 %v683, %v682
        %v685 = vld [vmem:[#allocation8] sm:$0xff]
        %v686 = vld [vmem:[#allocation8 + $0x8] sm:$0xf]
        %v687 = vld [vmem:[#allocation8 + $0xc] sm:$0xff]
        %v688 = vld [vmem:[#allocation8 + $0x14] sm:$0xf]
        %v689 = vld [vmem:[#allocation8 + $0x18] sm:$0xff]
        %v690 = vld [vmem:[#allocation8 + $0x20] sm:$0xf]
        %v691 = vld [vmem:[#allocation8 + $0x24] sm:$0xff]
        %v692 = vld [vmem:[#allocation8 + $0x2c] sm:$0xf]
        %v693 = vld [vmem:[#allocation8 + $0x30] sm:$0xff]
        %v694 = vld [vmem:[#allocation8 + $0x38] sm:$0xf]
        %v695 = vld [vmem:[#allocation8 + $0x3c] sm:$0xff]
        %v696 = vld [vmem:[#allocation8 + $0x44] sm:$0xf]
        %v697 = vld [vmem:[#allocation8 + $0x48] sm:$0xff]
        %v698 = vld [vmem:[#allocation8 + $0x50] sm:$0xf]
        %v699 = vld [vmem:[#allocation8 + $0x54] sm:$0xff]
        %v700 = vld [vmem:[#allocation8 + $0x5c] sm:$0xf]
        %v701 = vld [vmem:[#allocation8 + $0x60] sm:$0xff]
        %v702 = vld [vmem:[#allocation8 + $0x68] sm:$0xf]
        %v703 = vld [vmem:[#allocation8 + $0x6c] sm:$0xff]
        %v704 = vld [vmem:[#allocation8 + $0x74] sm:$0xf]
        %v705 = vld [vmem:[#allocation8 + $0x78] sm:$0xff]
        %v706 = vld [vmem:[#allocation8 + $0x80] sm:$0xf]
        %v707 = vld [vmem:[#allocation8 + $0x84] sm:$0xff]
        %v708 = vld [vmem:[#allocation8 + $0x8c] sm:$0xf]
        %v709 = vld [vmem:[#allocation8 + $0x90] sm:$0xff]
        %v710 = vld [vmem:[#allocation8 + $0x98] sm:$0xf]
        %v711 = vld [vmem:[#allocation8 + $0x9c] sm:$0xff]
        %v712 = vld [vmem:[#allocation8 + $0xa4] sm:$0xf]
        %v713 = vld [vmem:[#allocation8 + $0xa8] sm:$0xff]
        %v714 = vld [vmem:[#allocation8 + $0xb0] sm:$0xf]
        %v715 = vld [vmem:[#allocation8 + $0xb4] sm:$0xff]
        %v716 = vld [vmem:[#allocation8 + $0xbc] sm:$0xf]
        %v749 = vunpack.c.l.b16 %v685
        %v750 = vunpack.c.h.b16 %v685
        %v751 = vunpack.c.l.b16 %v686
        %v752 = vunpack.c.l.b16 %v687
        %v753 = vunpack.c.h.b16 %v687
        %v754 = vunpack.c.l.b16 %v688
        %v755 = vunpack.c.l.b16 %v689
        %v756 = vunpack.c.h.b16 %v689
        %v757 = vunpack.c.l.b16 %v690
        %v758 = vunpack.c.l.b16 %v691
        %v759 = vunpack.c.h.b16 %v691
        %v760 = vunpack.c.l.b16 %v692
        %v761 = vunpack.c.l.b16 %v693
        %v762 = vunpack.c.h.b16 %v693
        %v763 = vunpack.c.l.b16 %v694
        %v764 = vunpack.c.l.b16 %v695
        %v765 = vunpack.c.h.b16 %v695
        %v766 = vunpack.c.l.b16 %v696
        %v767 = vunpack.c.l.b16 %v697
        %v768 = vunpack.c.h.b16 %v697
        %v769 = vunpack.c.l.b16 %v698
        %v770 = vunpack.c.l.b16 %v699
        %v771 = vunpack.c.h.b16 %v699
        %v772 = vunpack.c.l.b16 %v700
        %v773 = vunpack.c.l.b16 %v701
        %v774 = vunpack.c.h.b16 %v701
        %v775 = vunpack.c.l.b16 %v702
        %v776 = vunpack.c.l.b16 %v703
        %v777 = vunpack.c.h.b16 %v703
        %v778 = vunpack.c.l.b16 %v704
        %v779 = vunpack.c.l.b16 %v705
        %v780 = vunpack.c.h.b16 %v705
        %v781 = vunpack.c.l.b16 %v706
        %v782 = vunpack.c.l.b16 %v707
        %v783 = vunpack.c.h.b16 %v707
        %v784 = vunpack.c.l.b16 %v708
        %v785 = vunpack.c.l.b16 %v709
        %v786 = vunpack.c.h.b16 %v709
        %v787 = vunpack.c.l.b16 %v710
        %v788 = vunpack.c.l.b16 %v711
        %v789 = vunpack.c.h.b16 %v711
        %v790 = vunpack.c.l.b16 %v712
        %v791 = vunpack.c.l.b16 %v713
        %v792 = vunpack.c.h.b16 %v713
        %v793 = vunpack.c.l.b16 %v714
        %v794 = vunpack.c.l.b16 %v715
        %v795 = vunpack.c.h.b16 %v715
        %v796 = vunpack.c.l.b16 %v716
        %v797 = vpack.c.b16 %v752, %v749
        %v798 = vpack.c.b16 %v753, %v750
        %v799 = vpack.c.b16 %v754, %v751
        %v800 = vpack.c.b16 %v758, %v755
        %v801 = vpack.c.b16 %v759, %v756
        %v802 = vpack.c.b16 %v760, %v757
        %v803 = vpack.c.b16 %v764, %v761
        %v804 = vpack.c.b16 %v765, %v762
        %v805 = vpack.c.b16 %v766, %v763
        %v806 = vpack.c.b16 %v770, %v767
        %v807 = vpack.c.b16 %v771, %v768
        %v808 = vpack.c.b16 %v772, %v769
        %v809 = vpack.c.b16 %v776, %v773
        %v810 = vpack.c.b16 %v777, %v774
        %v811 = vpack.c.b16 %v778, %v775
        %v812 = vpack.c.b16 %v782, %v779
        %v813 = vpack.c.b16 %v783, %v780
        %v814 = vpack.c.b16 %v784, %v781
        %v815 = vpack.c.b16 %v788, %v785
        %v816 = vpack.c.b16 %v789, %v786
        %v817 = vpack.c.b16 %v790, %v787
        %v818 = vpack.c.b16 %v794, %v791
        %v819 = vpack.c.b16 %v795, %v792
        %v820 = vpack.c.b16 %v796, %v793
        %845 = vmatprep.subr.bf16.mxu0 %v798
        %846 = vmatpush1.bf16.msra.mxu0 %v797
        %847 = vmatprep.subr.bf16.mxu0 %v801
        %848 = vmatpush1.bf16.msra.mxu0 %v800
        %849 = vmatprep.subr.bf16.mxu0 %v804
        %850 = vmatpush1.bf16.msra.mxu0 %v803
        %851 = vmatprep.subr.bf16.mxu0 %v807
        %852 = vmatpush1.bf16.msra.mxu0 %v806
        %853 = vmatprep.subr.bf16.mxu0 %v810
        %854 = vmatpush1.bf16.msra.mxu0 %v809
        %855 = vmatprep.subr.bf16.mxu0 %v813
        %856 = vmatpush1.bf16.msra.mxu0 %v812
        %857 = vmatprep.subr.bf16.mxu0 %v816
        %858 = vmatpush1.bf16.msra.mxu0 %v815
        %859 = vmatprep.subr.bf16.mxu0 %v819
        %860 = vmatpush1.bf16.msra.mxu0 %v818
        %861 = vmatprep.subr.bf16.mxu0 0
        %862 = vmatpush1.bf16.msra.mxu0 0
        %863 = vmatprep.subr.bf16.mxu0 0
        %864 = vmatpush1.bf16.msra.mxu0 0
        %865 = vmatprep.subr.bf16.mxu0 0
        %866 = vmatpush1.bf16.msra.mxu0 0
        %867 = vmatprep.subr.bf16.mxu0 0
        %868 = vmatpush1.bf16.msra.mxu0 0
        %869 = vmatprep.subr.bf16.mxu0 0
        %870 = vmatpush1.bf16.msra.mxu0 0
        %871 = vmatprep.subr.bf16.mxu0 0
        %872 = vmatpush1.bf16.msra.mxu0 0
        %873 = vmatprep.subr.bf16.mxu0 0
        %874 = vmatpush1.bf16.msra.mxu0 0
        %875 = vmatprep.subr.bf16.mxu0 0
        %876 = vmatpush1.bf16.msra.mxu0 0
        %877 = vmatprep.mubr.bf16.mxu0 0
        %878 = vmatmul.mubr.bf16.gmra.mrb[0].mxu0 %v684
        %v879 = vpop.f32.mrb[0].mxu0
        %v880 = vadd.f32 0.0, %v879
        %v881 = vpop.f32.mrb[0].mxu0
        %v882 = vadd.f32 0.0, %v881
        %v883 = vpop.f32.mrb[0].mxu0
        %v884 = vadd.f32 0.0, %v883
        %v885 = vpop.f32.mrb[0].mxu0
        %v886 = vadd.f32 0.0, %v885
        %887 = vdwg.mxu0
        %888 = vmatprep.subr.bf16.mxu0 0
        %889 = vmatpush1.bf16.msra.mxu0 %v799
        %890 = vmatprep.subr.bf16.mxu0 0
        %891 = vmatpush1.bf16.msra.mxu0 %v802
        %892 = vmatprep.subr.bf16.mxu0 0
        %893 = vmatpush1.bf16.msra.mxu0 %v805
        %894 = vmatprep.subr.bf16.mxu0 0
        %895 = vmatpush1.bf16.msra.mxu0 %v808
        %896 = vmatprep.subr.bf16.mxu0 0
        %897 = vmatpush1.bf16.msra.mxu0 %v811
        %898 = vmatprep.subr.bf16.mxu0 0
        %899 = vmatpush1.bf16.msra.mxu0 %v814
        %900 = vmatprep.subr.bf16.mxu0 0
        %901 = vmatpush1.bf16.msra.mxu0 %v817
        %902 = vmatprep.subr.bf16.mxu0 0
        %903 = vmatpush1.bf16.msra.mxu0 %v820
        %904 = vmatprep.subr.bf16.mxu0 0
        %905 = vmatpush1.bf16.msra.mxu0 0
        %906 = vmatprep.subr.bf16.mxu0 0
        %907 = vmatpush1.bf16.msra.mxu0 0
        %908 = vmatprep.subr.bf16.mxu0 0
        %909 = vmatpush1.bf16.msra.mxu0 0
        %910 = vmatprep.subr.bf16.mxu0 0
        %911 = vmatpush1.bf16.msra.mxu0 0
        %912 = vmatprep.subr.bf16.mxu0 0
        %913 = vmatpush1.bf16.msra.mxu0 0
        %914 = vmatprep.subr.bf16.mxu0 0
        %915 = vmatpush1.bf16.msra.mxu0 0
        %916 = vmatprep.subr.bf16.mxu0 0
        %917 = vmatpush1.bf16.msra.mxu0 0
        %918 = vmatprep.subr.bf16.mxu0 0
        %919 = vmatpush1.bf16.msra.mxu0 0
        %920 = vmatprep.mubr.bf16.mxu0 0
        %921 = vmatmul.mubr.bf16.gmra.mrb[0].mxu0 %v684
        %v922 = vpop.f32.mrb[0].mxu0
        %v923 = vadd.f32 0.0, %v922
        %v924 = vpop.f32.mrb[0].mxu0
        %v925 = vpop.f32.mrb[0].mxu0
        %v926 = vadd.f32 0.0, %v925
        %v927 = vpop.f32.mrb[0].mxu0
        %928 = vdwg.mxu0
        %v929 = vld [vmem:[#allocation10] sm:$0x1]
        %v931 = vlaneseq
        %v932 = vshrl.u32 %v931, 7
        %v933 = vsub.s32 0, %v932
        %v934 = vrot.slane %v929, %v933
        %v936 = vadd.f32 %v880, %v934
        %v937 = vadd.f32 %v884, %v934
        %v938 = vmul.f32 %v936, 0.01
        %v939 = vmul.f32 %v937, 0.01
        %v940 = vmax.f32 %v936, %v938
        %v941 = vmax.f32 %v937, %v939
        %v942 = vpack.c.bf16 %v941, %v940
        %v943 = vld [vmem:[#allocation11] sm:$0xff]
        %v944 = vld [vmem:[#allocation11 + $0x8] sm:$0xff]
        %v945 = vld [vmem:[#allocation11 + $0x10] sm:$0xff]
        %v946 = vld [vmem:[#allocation11 + $0x18] sm:$0xff]
        %v947 = vld [vmem:[#allocation11 + $0x20] sm:$0xff]
        %v948 = vld [vmem:[#allocation11 + $0x28] sm:$0xff]
        %v949 = vld [vmem:[#allocation11 + $0x30] sm:$0xff]
        %v950 = vld [vmem:[#allocation11 + $0x38] sm:$0xff]
        %v951 = vld [vmem:[#allocation11 + $0x40] sm:$0xff]
        %v952 = vld [vmem:[#allocation11 + $0x48] sm:$0xff]
        %v953 = vld [vmem:[#allocation11 + $0x50] sm:$0xff]
        %v954 = vld [vmem:[#allocation11 + $0x58] sm:$0xff]
        %v955 = vld [vmem:[#allocation11 + $0x60] sm:$0xff]
        %v956 = vld [vmem:[#allocation11 + $0x68] sm:$0xff]
        %v957 = vld [vmem:[#allocation11 + $0x70] sm:$0xff]
        %v958 = vld [vmem:[#allocation11 + $0x78] sm:$0xff]
        %v959 = vld [vmem:[#allocation13] sm:$0x3]
        %v961 = vlaneseq
        %v962 = vshrl.u32 %v961, 7
        %v963 = vsub.s32 0, %v962
        %v964 = vrot.slane %v959, %v963
        %v965 = vlaneseq
        %v966 = vshrl.u32 %v965, 7
        %v967 = vsub.s32 1, %v966
        %v968 = vrot.slane %v959, %v967
        %v987 = vunpack.c.l.b16 %v943
        %v988 = vunpack.c.h.b16 %v943
        %v989 = vunpack.c.l.b16 %v944
        %v990 = vunpack.c.h.b16 %v944
        %v991 = vunpack.c.l.b16 %v945
        %v992 = vunpack.c.h.b16 %v945
        %v993 = vunpack.c.l.b16 %v946
        %v994 = vunpack.c.h.b16 %v946
        %v995 = vunpack.c.l.b16 %v947
        %v996 = vunpack.c.h.b16 %v947
        %v997 = vunpack.c.l.b16 %v948
        %v998 = vunpack.c.h.b16 %v948
        %v999 = vunpack.c.l.b16 %v949
        %v1000 = vunpack.c.h.b16 %v949
        %v1001 = vunpack.c.l.b16 %v950
        %v1002 = vunpack.c.h.b16 %v950
        %v1003 = vunpack.c.l.b16 %v951
        %v1004 = vunpack.c.h.b16 %v951
        %v1005 = vunpack.c.l.b16 %v952
        %v1006 = vunpack.c.h.b16 %v952
        %v1007 = vunpack.c.l.b16 %v953
        %v1008 = vunpack.c.h.b16 %v953
        %v1009 = vunpack.c.l.b16 %v954
        %v1010 = vunpack.c.h.b16 %v954
        %v1011 = vunpack.c.l.b16 %v955
        %v1012 = vunpack.c.h.b16 %v955
        %v1013 = vunpack.c.l.b16 %v956
        %v1014 = vunpack.c.h.b16 %v956
        %v1015 = vunpack.c.l.b16 %v957
        %v1016 = vunpack.c.h.b16 %v957
        %v1017 = vunpack.c.l.b16 %v958
        %v1018 = vunpack.c.h.b16 %v958
        %v1019 = vpack.c.b16 %v989, %v987
        %v1020 = vpack.c.b16 %v990, %v988
        %v1021 = vpack.c.b16 %v993, %v991
        %v1022 = vpack.c.b16 %v994, %v992
        %v1023 = vpack.c.b16 %v997, %v995
        %v1024 = vpack.c.b16 %v998, %v996
        %v1025 = vpack.c.b16 %v1001, %v999
        %v1026 = vpack.c.b16 %v1002, %v1000
        %v1027 = vpack.c.b16 %v1005, %v1003
        %v1028 = vpack.c.b16 %v1006, %v1004
        %v1029 = vpack.c.b16 %v1009, %v1007
        %v1030 = vpack.c.b16 %v1010, %v1008
        %v1031 = vpack.c.b16 %v1013, %v1011
        %v1032 = vpack.c.b16 %v1014, %v1012
        %v1033 = vpack.c.b16 %v1017, %v1015
        %v1034 = vpack.c.b16 %v1018, %v1016
        %1051 = vmatprep.subr.bf16.mxu0 %v1020
        %1052 = vmatpush1.bf16.msra.mxu0 %v1019
        %1053 = vmatprep.subr.bf16.mxu0 %v1022
        %1054 = vmatpush1.bf16.msra.mxu0 %v1021
        %1055 = vmatprep.subr.bf16.mxu0 %v1024
        %1056 = vmatpush1.bf16.msra.mxu0 %v1023
        %1057 = vmatprep.subr.bf16.mxu0 %v1026
        %1058 = vmatpush1.bf16.msra.mxu0 %v1025
        %1059 = vmatprep.subr.bf16.mxu0 %v1028
        %1060 = vmatpush1.bf16.msra.mxu0 %v1027
        %1061 = vmatprep.subr.bf16.mxu0 %v1030
        %1062 = vmatpush1.bf16.msra.mxu0 %v1029
        %1063 = vmatprep.subr.bf16.mxu0 %v1032
        %1064 = vmatpush1.bf16.msra.mxu0 %v1031
        %1065 = vmatprep.subr.bf16.mxu0 %v1034
        %1066 = vmatpush1.bf16.msra.mxu0 %v1033
        %1067 = vmatprep.subr.bf16.mxu0 0
        %1068 = vmatpush1.bf16.msra.mxu0 0
        %1069 = vmatprep.subr.bf16.mxu0 0
        %1070 = vmatpush1.bf16.msra.mxu0 0
        %1071 = vmatprep.subr.bf16.mxu0 0
        %1072 = vmatpush1.bf16.msra.mxu0 0
        %1073 = vmatprep.subr.bf16.mxu0 0
        %1074 = vmatpush1.bf16.msra.mxu0 0
        %1075 = vmatprep.subr.bf16.mxu0 0
        %1076 = vmatpush1.bf16.msra.mxu0 0
        %1077 = vmatprep.subr.bf16.mxu0 0
        %1078 = vmatpush1.bf16.msra.mxu0 0
        %1079 = vmatprep.subr.bf16.mxu0 0
        %1080 = vmatpush1.bf16.msra.mxu0 0
        %1081 = vmatprep.subr.bf16.mxu0 0
        %1082 = vmatpush1.bf16.msra.mxu0 0
        %1083 = vmatprep.mubr.bf16.mxu0 0
        %1084 = vmatmul.mubr.bf16.gmra.mrb[0].mxu0 %v942
        %v1085 = vpop.f32.mrb[0].mxu0
        %v1086 = vadd.f32 %v964, %v1085
        %v1087 = vpop.f32.mrb[0].mxu0
        %v1088 = vadd.f32 %v968, %v1087
        %v1089 = vpop.f32.mrb[0].mxu0
        %v1090 = vadd.f32 %v964, %v1089
        %v1091 = vpop.f32.mrb[0].mxu0
        %v1092 = vadd.f32 %v968, %v1091
        %1093 = vdwg.mxu0
        %v1094 = vmul.f32 %v1086, 0.01
        %v1095 = vmul.f32 %v1088, 0.01
        %v1096 = vmul.f32 %v1090, 0.01
        %v1097 = vmul.f32 %v1092, 0.01
        %v1098 = vmax.f32 %v1086, %v1094
        %v1099 = vmax.f32 %v1088, %v1095
        %v1100 = vmax.f32 %v1090, %v1096
        %v1101 = vmax.f32 %v1092, %v1097
        %v1102 = vmax.f32 %v1098, %v1100
        %v1103 = vrot.slane %v1102, 4
        %v1104 = vmax.f32 %v1102, %v1103
        %v1105 = vrot.slane %v1104, 2
        %v1106 = vmax.f32 %v1104, %v1105
        %v1107 = vrot.slane %v1106, 1
        %v1108 = vmax.f32 %v1106, %v1107
        %v1109 = vmax.f32 %v1099, %v1101
        %v1110 = vrot.slane %v1109, 4
        %v1111 = vmax.f32 %v1109, %v1110
        %v1112 = vrot.slane %v1111, 2
        %v1113 = vmax.f32 %v1111, %v1112
        %v1114 = vrot.slane %v1113, 1
        %v1115 = vmax.f32 %v1113, %v1114
        %v1116 = vpack.c.bf16 %v1108, %v1108
        %v1117 = vpack.c.bf16 %v1115, %v1115
        %v1118 = vld [vmem:[#allocation14] sm:$0xff]
        %v1119 = vld [vmem:[#allocation14 + $0x8] sm:$0xff]
        %v1120 = vld [vmem:[#allocation14 + $0x10] sm:$0xff]
        %v1121 = vld [vmem:[#allocation14 + $0x18] sm:$0xff]
        %v1122 = vld [vmem:[#allocation14 + $0x20] sm:$0xff]
        %v1123 = vld [vmem:[#allocation14 + $0x28] sm:$0xff]
        %v1124 = vld [vmem:[#allocation14 + $0x30] sm:$0xff]
        %v1125 = vld [vmem:[#allocation14 + $0x38] sm:$0xff]
        %v1126 = vld [vmem:[#allocation14 + $0x40] sm:$0xff]
        %v1127 = vld [vmem:[#allocation14 + $0x48] sm:$0xff]
        %v1128 = vld [vmem:[#allocation14 + $0x50] sm:$0xff]
        %v1129 = vld [vmem:[#allocation14 + $0x58] sm:$0xff]
        %v1130 = vld [vmem:[#allocation14 + $0x60] sm:$0xff]
        %v1131 = vld [vmem:[#allocation14 + $0x68] sm:$0xff]
        %v1132 = vld [vmem:[#allocation14 + $0x70] sm:$0xff]
        %v1133 = vld [vmem:[#allocation14 + $0x78] sm:$0xff]
        %v1134 = vld [vmem:[#allocation14 + $0x80] sm:$0xff]
        %v1135 = vld [vmem:[#allocation14 + $0x88] sm:$0xff]
        %v1136 = vld [vmem:[#allocation14 + $0x90] sm:$0xff]
        %v1137 = vld [vmem:[#allocation14 + $0x98] sm:$0xff]
        %v1138 = vld [vmem:[#allocation14 + $0xa0] sm:$0xff]
        %v1139 = vld [vmem:[#allocation14 + $0xa8] sm:$0xff]
        %v1140 = vld [vmem:[#allocation14 + $0xb0] sm:$0xff]
        %v1141 = vld [vmem:[#allocation14 + $0xb8] sm:$0xff]
        %v1142 = vld [vmem:[#allocation14 + $0xc0] sm:$0xff]
        %v1143 = vld [vmem:[#allocation14 + $0xc8] sm:$0xff]
        %v1144 = vld [vmem:[#allocation14 + $0xd0] sm:$0xff]
        %v1145 = vld [vmem:[#allocation14 + $0xd8] sm:$0xff]
        %v1146 = vld [vmem:[#allocation14 + $0xe0] sm:$0xff]
        %v1147 = vld [vmem:[#allocation14 + $0xe8] sm:$0xff]
        %v1148 = vld [vmem:[#allocation14 + $0xf0] sm:$0xff]
        %v1149 = vld [vmem:[#allocation14 + $0xf8] sm:$0xff]
        %v1150 = vld [vmem:[#allocation16] sm:$0x3]
        %v1183 = vunpack.c.l.b16 %v1118
        %v1184 = vunpack.c.h.b16 %v1118
        %v1185 = vunpack.c.l.b16 %v1119
        %v1186 = vunpack.c.h.b16 %v1119
        %v1187 = vunpack.c.l.b16 %v1120
        %v1188 = vunpack.c.h.b16 %v1120
        %v1189 = vunpack.c.l.b16 %v1121
        %v1190 = vunpack.c.h.b16 %v1121
        %v1191 = vunpack.c.l.b16 %v1122
        %v1192 = vunpack.c.h.b16 %v1122
        %v1193 = vunpack.c.l.b16 %v1123
        %v1194 = vunpack.c.h.b16 %v1123
        %v1195 = vunpack.c.l.b16 %v1124
        %v1196 = vunpack.c.h.b16 %v1124
        %v1197 = vunpack.c.l.b16 %v1125
        %v1198 = vunpack.c.h.b16 %v1125
        %v1199 = vunpack.c.l.b16 %v1126
        %v1200 = vunpack.c.h.b16 %v1126
        %v1201 = vunpack.c.l.b16 %v1127
        %v1202 = vunpack.c.h.b16 %v1127
        %v1203 = vunpack.c.l.b16 %v1128
        %v1204 = vunpack.c.h.b16 %v1128
        %v1205 = vunpack.c.l.b16 %v1129
        %v1206 = vunpack.c.h.b16 %v1129
        %v1207 = vunpack.c.l.b16 %v1130
        %v1208 = vunpack.c.h.b16 %v1130
        %v1209 = vunpack.c.l.b16 %v1131
        %v1210 = vunpack.c.h.b16 %v1131
        %v1211 = vunpack.c.l.b16 %v1132
        %v1212 = vunpack.c.h.b16 %v1132
        %v1213 = vunpack.c.l.b16 %v1133
        %v1214 = vunpack.c.h.b16 %v1133
        %v1215 = vunpack.c.l.b16 %v1134
        %v1216 = vunpack.c.h.b16 %v1134
        %v1217 = vunpack.c.l.b16 %v1135
        %v1218 = vunpack.c.h.b16 %v1135
        %v1219 = vunpack.c.l.b16 %v1136
        %v1220 = vunpack.c.h.b16 %v1136
        %v1221 = vunpack.c.l.b16 %v1137
        %v1222 = vunpack.c.h.b16 %v1137
        %v1223 = vunpack.c.l.b16 %v1138
        %v1224 = vunpack.c.h.b16 %v1138
        %v1225 = vunpack.c.l.b16 %v1139
        %v1226 = vunpack.c.h.b16 %v1139
        %v1227 = vunpack.c.l.b16 %v1140
        %v1228 = vunpack.c.h.b16 %v1140
        %v1229 = vunpack.c.l.b16 %v1141
        %v1230 = vunpack.c.h.b16 %v1141
        %v1231 = vunpack.c.l.b16 %v1142
        %v1232 = vunpack.c.h.b16 %v1142
        %v1233 = vunpack.c.l.b16 %v1143
        %v1234 = vunpack.c.h.b16 %v1143
        %v1235 = vunpack.c.l.b16 %v1144
        %v1236 = vunpack.c.h.b16 %v1144
        %v1237 = vunpack.c.l.b16 %v1145
        %v1238 = vunpack.c.h.b16 %v1145
        %v1239 = vunpack.c.l.b16 %v1146
        %v1240 = vunpack.c.h.b16 %v1146
        %v1241 = vunpack.c.l.b16 %v1147
        %v1242 = vunpack.c.h.b16 %v1147
        %v1243 = vunpack.c.l.b16 %v1148
        %v1244 = vunpack.c.h.b16 %v1148
        %v1245 = vunpack.c.l.b16 %v1149
        %v1246 = vunpack.c.h.b16 %v1149
        %v1247 = vpack.c.b16 %v1185, %v1183
        %v1248 = vpack.c.b16 %v1186, %v1184
        %v1249 = vpack.c.b16 %v1189, %v1187
        %v1250 = vpack.c.b16 %v1190, %v1188
        %v1251 = vpack.c.b16 %v1193, %v1191
        %v1252 = vpack.c.b16 %v1194, %v1192
        %v1253 = vpack.c.b16 %v1197, %v1195
        %v1254 = vpack.c.b16 %v1198, %v1196
        %v1255 = vpack.c.b16 %v1201, %v1199
        %v1256 = vpack.c.b16 %v1202, %v1200
        %v1257 = vpack.c.b16 %v1205, %v1203
        %v1258 = vpack.c.b16 %v1206, %v1204
        %v1259 = vpack.c.b16 %v1209, %v1207
        %v1260 = vpack.c.b16 %v1210, %v1208
        %v1261 = vpack.c.b16 %v1213, %v1211
        %v1262 = vpack.c.b16 %v1214, %v1212
        %v1263 = vpack.c.b16 %v1217, %v1215
        %v1264 = vpack.c.b16 %v1218, %v1216
        %v1265 = vpack.c.b16 %v1221, %v1219
        %v1266 = vpack.c.b16 %v1222, %v1220
        %v1267 = vpack.c.b16 %v1225, %v1223
        %v1268 = vpack.c.b16 %v1226, %v1224
        %v1269 = vpack.c.b16 %v1229, %v1227
        %v1270 = vpack.c.b16 %v1230, %v1228
        %v1271 = vpack.c.b16 %v1233, %v1231
        %v1272 = vpack.c.b16 %v1234, %v1232
        %v1273 = vpack.c.b16 %v1237, %v1235
        %v1274 = vpack.c.b16 %v1238, %v1236
        %v1275 = vpack.c.b16 %v1241, %v1239
        %v1276 = vpack.c.b16 %v1242, %v1240
        %v1277 = vpack.c.b16 %v1245, %v1243
        %v1278 = vpack.c.b16 %v1246, %v1244
        %v1312 = vlaneseq
        %v1313 = vshrl.u32 %v1312, 7
        %v1314 = vsub.s32 0, %v1313
        %v1315 = vrot.slane %v1150, %v1314
        %v1316 = vlaneseq
        %v1317 = vshrl.u32 %v1316, 7
        %v1318 = vsub.s32 1, %v1317
        %v1319 = vrot.slane %v1150, %v1318
        %1322 = vmatprep.subr.bf16.mxu0 %v1248
        %1323 = vmatpush1.bf16.msra.mxu0 %v1247
        %1324 = vmatprep.subr.bf16.mxu0 %v1250
        %1325 = vmatpush1.bf16.msra.mxu0 %v1249
        %1326 = vmatprep.subr.bf16.mxu0 %v1252
        %1327 = vmatpush1.bf16.msra.mxu0 %v1251
        %1328 = vmatprep.subr.bf16.mxu0 %v1254
        %1329 = vmatpush1.bf16.msra.mxu0 %v1253
        %1330 = vmatprep.subr.bf16.mxu0 %v1256
        %1331 = vmatpush1.bf16.msra.mxu0 %v1255
        %1332 = vmatprep.subr.bf16.mxu0 %v1258
        %1333 = vmatpush1.bf16.msra.mxu0 %v1257
        %1334 = vmatprep.subr.bf16.mxu0 %v1260
        %1335 = vmatpush1.bf16.msra.mxu0 %v1259
        %1336 = vmatprep.subr.bf16.mxu0 %v1262
        %1337 = vmatpush1.bf16.msra.mxu0 %v1261
        %1338 = vmatprep.subr.bf16.mxu0 %v1264
        %1339 = vmatpush1.bf16.msra.mxu0 %v1263
        %1340 = vmatprep.subr.bf16.mxu0 %v1266
        %1341 = vmatpush1.bf16.msra.mxu0 %v1265
        %1342 = vmatprep.subr.bf16.mxu0 %v1268
        %1343 = vmatpush1.bf16.msra.mxu0 %v1267
        %1344 = vmatprep.subr.bf16.mxu0 %v1270
        %1345 = vmatpush1.bf16.msra.mxu0 %v1269
        %1346 = vmatprep.subr.bf16.mxu0 %v1272
        %1347 = vmatpush1.bf16.msra.mxu0 %v1271
        %1348 = vmatprep.subr.bf16.mxu0 %v1274
        %1349 = vmatpush1.bf16.msra.mxu0 %v1273
        %1350 = vmatprep.subr.bf16.mxu0 %v1276
        %1351 = vmatpush1.bf16.msra.mxu0 %v1275
        %1352 = vmatprep.subr.bf16.mxu0 %v1278
        %1353 = vmatpush1.bf16.msra.mxu0 %v1277
        %1354 = vmatprep.mubr.bf16.mxu0 %v1117
        %1355 = vmatmul.mubr.bf16.gmra.mrb[0].mxu0 %v1116
        %v1356 = vpop.f32.mrb[0].mxu0
        %v1357 = vadd.f32 %v1315, %v1356
        %v1358 = vpop.f32.mrb[0].mxu0
        %v1359 = vadd.f32 %v1319, %v1358
        %v1360 = vpop.f32.mrb[0].mxu0
        %v1361 = vpop.f32.mrb[0].mxu0
        %1362 = vdwg.mxu0
        %v1363 = vlaneseq
        %v1364 = vshrl.u32 %v1363, 7
        %v1365 = vsub.s32 0, %v1364
        %v1366 = vrot.slane %v1357, %v1365
        %v1367 = vlaneseq
        %v1368 = vshrl.u32 %v1367, 7
        %v1369 = vsub.s32 0, %v1368
        %v1370 = vrot.slane %v1359, %v1369
        %v1371 = vadd.f32 %v882, %v1366
        %v1372 = vadd.f32 %v923, %v1370
        %v1373 = vadd.f32 %v886, %v1366
        %v1374 = vadd.f32 %v926, %v1370
        %v1375 = vmul.f32 %v1371, 0.01
        %v1376 = vmul.f32 %v1372, 0.01
        %v1377 = vmul.f32 %v1373, 0.01
        %v1378 = vmul.f32 %v1374, 0.01
        %v1379 = vmax.f32 %v1371, %v1375
        %v1380 = vmax.f32 %v1372, %v1376
        %v1381 = vmax.f32 %v1373, %v1377
        %v1382 = vmax.f32 %v1374, %v1378
        %v1383 = vpack.c.bf16 %v1381, %v1379
        %v1384 = vpack.c.bf16 %v1382, %v1380
        %v1385 = vld [vmem:[#allocation17] sm:$0xff]
        %v1386 = vld [vmem:[#allocation17 + $0x8] sm:$0xff]
        %v1387 = vld [vmem:[#allocation17 + $0x10] sm:$0xff]
        %v1388 = vld [vmem:[#allocation17 + $0x18] sm:$0xff]
        %v1389 = vld [vmem:[#allocation17 + $0x20] sm:$0xff]
        %v1390 = vld [vmem:[#allocation17 + $0x28] sm:$0xff]
        %v1391 = vld [vmem:[#allocation17 + $0x30] sm:$0xff]
        %v1392 = vld [vmem:[#allocation17 + $0x38] sm:$0xff]
        %v1393 = vld [vmem:[#allocation17 + $0x40] sm:$0xff]
        %v1394 = vld [vmem:[#allocation17 + $0x48] sm:$0xff]
        %v1395 = vld [vmem:[#allocation17 + $0x50] sm:$0xff]
        %v1396 = vld [vmem:[#allocation17 + $0x58] sm:$0xff]
        %v1397 = vld [vmem:[#allocation17 + $0x60] sm:$0xff]
        %v1398 = vld [vmem:[#allocation17 + $0x68] sm:$0xff]
        %v1399 = vld [vmem:[#allocation17 + $0x70] sm:$0xff]
        %v1400 = vld [vmem:[#allocation17 + $0x78] sm:$0xff]
        %v1401 = vld [vmem:[#allocation17 + $0x80] sm:$0xff]
        %v1402 = vld [vmem:[#allocation17 + $0x88] sm:$0xff]
        %v1403 = vld [vmem:[#allocation17 + $0x90] sm:$0xff]
        %v1404 = vld [vmem:[#allocation17 + $0x98] sm:$0xff]
        %v1405 = vld [vmem:[#allocation17 + $0xa0] sm:$0xff]
        %v1406 = vld [vmem:[#allocation17 + $0xa8] sm:$0xff]
        %v1407 = vld [vmem:[#allocation17 + $0xb0] sm:$0xff]
        %v1408 = vld [vmem:[#allocation17 + $0xb8] sm:$0xff]
        %v1409 = vld [vmem:[#allocation17 + $0xc0] sm:$0xff]
        %v1410 = vld [vmem:[#allocation17 + $0xc8] sm:$0xff]
        %v1411 = vld [vmem:[#allocation17 + $0xd0] sm:$0xff]
        %v1412 = vld [vmem:[#allocation17 + $0xd8] sm:$0xff]
        %v1413 = vld [vmem:[#allocation17 + $0xe0] sm:$0xff]
        %v1414 = vld [vmem:[#allocation17 + $0xe8] sm:$0xff]
        %v1415 = vld [vmem:[#allocation17 + $0xf0] sm:$0xff]
        %v1416 = vld [vmem:[#allocation17 + $0xf8] sm:$0xff]
        %v1417 = vld [vmem:[#allocation19] sm:$0x3]
        %v1419 = vlaneseq
        %v1420 = vshrl.u32 %v1419, 7
        %v1421 = vsub.s32 0, %v1420
        %v1422 = vrot.slane %v1417, %v1421
        %v1423 = vlaneseq
        %v1424 = vshrl.u32 %v1423, 7
        %v1425 = vsub.s32 1, %v1424
        %v1426 = vrot.slane %v1417, %v1425
        %v1461 = vunpack.c.l.b16 %v1385
        %v1462 = vunpack.c.h.b16 %v1385
        %v1463 = vunpack.c.l.b16 %v1386
        %v1464 = vunpack.c.h.b16 %v1386
        %v1465 = vunpack.c.l.b16 %v1387
        %v1466 = vunpack.c.h.b16 %v1387
        %v1467 = vunpack.c.l.b16 %v1388
        %v1468 = vunpack.c.h.b16 %v1388
        %v1469 = vunpack.c.l.b16 %v1389
        %v1470 = vunpack.c.h.b16 %v1389
        %v1471 = vunpack.c.l.b16 %v1390
        %v1472 = vunpack.c.h.b16 %v1390
        %v1473 = vunpack.c.l.b16 %v1391
        %v1474 = vunpack.c.h.b16 %v1391
        %v1475 = vunpack.c.l.b16 %v1392
        %v1476 = vunpack.c.h.b16 %v1392
        %v1477 = vunpack.c.l.b16 %v1393
        %v1478 = vunpack.c.h.b16 %v1393
        %v1479 = vunpack.c.l.b16 %v1394
        %v1480 = vunpack.c.h.b16 %v1394
        %v1481 = vunpack.c.l.b16 %v1395
        %v1482 = vunpack.c.h.b16 %v1395
        %v1483 = vunpack.c.l.b16 %v1396
        %v1484 = vunpack.c.h.b16 %v1396
        %v1485 = vunpack.c.l.b16 %v1397
        %v1486 = vunpack.c.h.b16 %v1397
        %v1487 = vunpack.c.l.b16 %v1398
        %v1488 = vunpack.c.h.b16 %v1398
        %v1489 = vunpack.c.l.b16 %v1399
        %v1490 = vunpack.c.h.b16 %v1399
        %v1491 = vunpack.c.l.b16 %v1400
        %v1492 = vunpack.c.h.b16 %v1400
        %v1493 = vunpack.c.l.b16 %v1401
        %v1494 = vunpack.c.h.b16 %v1401
        %v1495 = vunpack.c.l.b16 %v1402
        %v1496 = vunpack.c.h.b16 %v1402
        %v1497 = vunpack.c.l.b16 %v1403
        %v1498 = vunpack.c.h.b16 %v1403
        %v1499 = vunpack.c.l.b16 %v1404
        %v1500 = vunpack.c.h.b16 %v1404
        %v1501 = vunpack.c.l.b16 %v1405
        %v1502 = vunpack.c.h.b16 %v1405
        %v1503 = vunpack.c.l.b16 %v1406
        %v1504 = vunpack.c.h.b16 %v1406
        %v1505 = vunpack.c.l.b16 %v1407
        %v1506 = vunpack.c.h.b16 %v1407
        %v1507 = vunpack.c.l.b16 %v1408
        %v1508 = vunpack.c.h.b16 %v1408
        %v1509 = vunpack.c.l.b16 %v1409
        %v1510 = vunpack.c.h.b16 %v1409
        %v1511 = vunpack.c.l.b16 %v1410
        %v1512 = vunpack.c.h.b16 %v1410
        %v1513 = vunpack.c.l.b16 %v1411
        %v1514 = vunpack.c.h.b16 %v1411
        %v1515 = vunpack.c.l.b16 %v1412
        %v1516 = vunpack.c.h.b16 %v1412
        %v1517 = vunpack.c.l.b16 %v1413
        %v1518 = vunpack.c.h.b16 %v1413
        %v1519 = vunpack.c.l.b16 %v1414
        %v1520 = vunpack.c.h.b16 %v1414
        %v1521 = vunpack.c.l.b16 %v1415
        %v1522 = vunpack.c.h.b16 %v1415
        %v1523 = vunpack.c.l.b16 %v1416
        %v1524 = vunpack.c.h.b16 %v1416
        %v1525 = vpack.c.b16 %v1463, %v1461
        %v1526 = vpack.c.b16 %v1464, %v1462
        %v1527 = vpack.c.b16 %v1467, %v1465
        %v1528 = vpack.c.b16 %v1468, %v1466
        %v1529 = vpack.c.b16 %v1471, %v1469
        %v1530 = vpack.c.b16 %v1472, %v1470
        %v1531 = vpack.c.b16 %v1475, %v1473
        %v1532 = vpack.c.b16 %v1476, %v1474
        %v1533 = vpack.c.b16 %v1479, %v1477
        %v1534 = vpack.c.b16 %v1480, %v1478
        %v1535 = vpack.c.b16 %v1483, %v1481
        %v1536 = vpack.c.b16 %v1484, %v1482
        %v1537 = vpack.c.b16 %v1487, %v1485
        %v1538 = vpack.c.b16 %v1488, %v1486
        %v1539 = vpack.c.b16 %v1491, %v1489
        %v1540 = vpack.c.b16 %v1492, %v1490
        %v1541 = vpack.c.b16 %v1495, %v1493
        %v1542 = vpack.c.b16 %v1496, %v1494
        %v1543 = vpack.c.b16 %v1499, %v1497
        %v1544 = vpack.c.b16 %v1500, %v1498
        %v1545 = vpack.c.b16 %v1503, %v1501
        %v1546 = vpack.c.b16 %v1504, %v1502
        %v1547 = vpack.c.b16 %v1507, %v1505
        %v1548 = vpack.c.b16 %v1508, %v1506
        %v1549 = vpack.c.b16 %v1511, %v1509
        %v1550 = vpack.c.b16 %v1512, %v1510
        %v1551 = vpack.c.b16 %v1515, %v1513
        %v1552 = vpack.c.b16 %v1516, %v1514
        %v1553 = vpack.c.b16 %v1519, %v1517
        %v1554 = vpack.c.b16 %v1520, %v1518
        %v1555 = vpack.c.b16 %v1523, %v1521
        %v1556 = vpack.c.b16 %v1524, %v1522
        %1589 = vmatprep.subr.bf16.mxu0 %v1526
        %1590 = vmatpush1.bf16.msra.mxu0 %v1525
        %1591 = vmatprep.subr.bf16.mxu0 %v1528
        %1592 = vmatpush1.bf16.msra.mxu0 %v1527
        %1593 = vmatprep.subr.bf16.mxu0 %v1530
        %1594 = vmatpush1.bf16.msra.mxu0 %v1529
        %1595 = vmatprep.subr.bf16.mxu0 %v1532
        %1596 = vmatpush1.bf16.msra.mxu0 %v1531
        %1597 = vmatprep.subr.bf16.mxu0 %v1534
        %1598 = vmatpush1.bf16.msra.mxu0 %v1533
        %1599 = vmatprep.subr.bf16.mxu0 %v1536
        %1600 = vmatpush1.bf16.msra.mxu0 %v1535
        %1601 = vmatprep.subr.bf16.mxu0 %v1538
        %1602 = vmatpush1.bf16.msra.mxu0 %v1537
        %1603 = vmatprep.subr.bf16.mxu0 %v1540
        %1604 = vmatpush1.bf16.msra.mxu0 %v1539
        %1605 = vmatprep.subr.bf16.mxu0 %v1542
        %1606 = vmatpush1.bf16.msra.mxu0 %v1541
        %1607 = vmatprep.subr.bf16.mxu0 %v1544
        %1608 = vmatpush1.bf16.msra.mxu0 %v1543
        %1609 = vmatprep.subr.bf16.mxu0 %v1546
        %1610 = vmatpush1.bf16.msra.mxu0 %v1545
        %1611 = vmatprep.subr.bf16.mxu0 %v1548
        %1612 = vmatpush1.bf16.msra.mxu0 %v1547
        %1613 = vmatprep.subr.bf16.mxu0 %v1550
        %1614 = vmatpush1.bf16.msra.mxu0 %v1549
        %1615 = vmatprep.subr.bf16.mxu0 %v1552
        %1616 = vmatpush1.bf16.msra.mxu0 %v1551
        %1617 = vmatprep.subr.bf16.mxu0 %v1554
        %1618 = vmatpush1.bf16.msra.mxu0 %v1553
        %1619 = vmatprep.subr.bf16.mxu0 %v1556
        %1620 = vmatpush1.bf16.msra.mxu0 %v1555
        %1621 = vmatprep.mubr.bf16.mxu0 %v1384
        %1622 = vmatmul.mubr.bf16.gmra.mrb[0].mxu0 %v1383
        %v1623 = vpop.f32.mrb[0].mxu0
        %v1624 = vadd.f32 %v1422, %v1623
        %v1625 = vpop.f32.mrb[0].mxu0
        %v1626 = vadd.f32 %v1426, %v1625
        %v1627 = vpop.f32.mrb[0].mxu0
        %v1628 = vadd.f32 %v1422, %v1627
        %v1629 = vpop.f32.mrb[0].mxu0
        %v1630 = vadd.f32 %v1426, %v1629
        %1631 = vdwg.mxu0
        %v1632 = vmul.f32 %v1624, 0.01
        %v1633 = vmul.f32 %v1626, 0.01
        %v1634 = vmul.f32 %v1628, 0.01
        %v1635 = vmul.f32 %v1630, 0.01
        %v1636 = vmax.f32 %v1624, %v1632
        %v1637 = vmax.f32 %v1626, %v1633
        %v1638 = vmax.f32 %v1628, %v1634
        %v1639 = vmax.f32 %v1630, %v1635
        %v1640 = vpack.c.bf16 %v1638, %v1636
        %v1641 = vpack.c.bf16 %v1639, %v1637
        %v1642 = vld [vmem:[#allocation20] sm:$0xff]
        %v1643 = vld [vmem:[#allocation20 + $0x8] sm:$0xff]
        %v1644 = vld [vmem:[#allocation20 + $0x10] sm:$0xff]
        %v1645 = vld [vmem:[#allocation20 + $0x18] sm:$0xff]
        %v1646 = vld [vmem:[#allocation20 + $0x20] sm:$0xff]
        %v1647 = vld [vmem:[#allocation20 + $0x28] sm:$0xff]
        %v1648 = vld [vmem:[#allocation20 + $0x30] sm:$0xff]
        %v1649 = vld [vmem:[#allocation20 + $0x38] sm:$0xff]
        %v1650 = vld [vmem:[#allocation20 + $0x40] sm:$0xff]
        %v1651 = vld [vmem:[#allocation20 + $0x48] sm:$0xff]
        %v1652 = vld [vmem:[#allocation20 + $0x50] sm:$0xff]
        %v1653 = vld [vmem:[#allocation20 + $0x58] sm:$0xff]
        %v1654 = vld [vmem:[#allocation20 + $0x60] sm:$0xff]
        %v1655 = vld [vmem:[#allocation20 + $0x68] sm:$0xff]
        %v1656 = vld [vmem:[#allocation20 + $0x70] sm:$0xff]
        %v1657 = vld [vmem:[#allocation20 + $0x78] sm:$0xff]
        %v1658 = vld [vmem:[#allocation20 + $0x80] sm:$0xff]
        %v1659 = vld [vmem:[#allocation20 + $0x88] sm:$0xff]
        %v1660 = vld [vmem:[#allocation20 + $0x90] sm:$0xff]
        %v1661 = vld [vmem:[#allocation20 + $0x98] sm:$0xff]
        %v1662 = vld [vmem:[#allocation20 + $0xa0] sm:$0xff]
        %v1663 = vld [vmem:[#allocation20 + $0xa8] sm:$0xff]
        %v1664 = vld [vmem:[#allocation20 + $0xb0] sm:$0xff]
        %v1665 = vld [vmem:[#allocation20 + $0xb8] sm:$0xff]
        %v1666 = vld [vmem:[#allocation20 + $0xc0] sm:$0xff]
        %v1667 = vld [vmem:[#allocation20 + $0xc8] sm:$0xff]
        %v1668 = vld [vmem:[#allocation20 + $0xd0] sm:$0xff]
        %v1669 = vld [vmem:[#allocation20 + $0xd8] sm:$0xff]
        %v1670 = vld [vmem:[#allocation20 + $0xe0] sm:$0xff]
        %v1671 = vld [vmem:[#allocation20 + $0xe8] sm:$0xff]
        %v1672 = vld [vmem:[#allocation20 + $0xf0] sm:$0xff]
        %v1673 = vld [vmem:[#allocation20 + $0xf8] sm:$0xff]
        %v1674 = vld [vmem:[#allocation22] sm:$0x3]
        %v1676 = vlaneseq
        %v1677 = vshrl.u32 %v1676, 7
        %v1678 = vsub.s32 0, %v1677
        %v1679 = vrot.slane %v1674, %v1678
        %v1680 = vlaneseq
        %v1681 = vshrl.u32 %v1680, 7
        %v1682 = vsub.s32 1, %v1681
        %v1683 = vrot.slane %v1674, %v1682
        %v1718 = vunpack.c.l.b16 %v1642
        %v1719 = vunpack.c.h.b16 %v1642
        %v1720 = vunpack.c.l.b16 %v1643
        %v1721 = vunpack.c.h.b16 %v1643
        %v1722 = vunpack.c.l.b16 %v1644
        %v1723 = vunpack.c.h.b16 %v1644
        %v1724 = vunpack.c.l.b16 %v1645
        %v1725 = vunpack.c.h.b16 %v1645
        %v1726 = vunpack.c.l.b16 %v1646
        %v1727 = vunpack.c.h.b16 %v1646
        %v1728 = vunpack.c.l.b16 %v1647
        %v1729 = vunpack.c.h.b16 %v1647
        %v1730 = vunpack.c.l.b16 %v1648
        %v1731 = vunpack.c.h.b16 %v1648
        %v1732 = vunpack.c.l.b16 %v1649
        %v1733 = vunpack.c.h.b16 %v1649
        %v1734 = vunpack.c.l.b16 %v1650
        %v1735 = vunpack.c.h.b16 %v1650
        %v1736 = vunpack.c.l.b16 %v1651
        %v1737 = vunpack.c.h.b16 %v1651
        %v1738 = vunpack.c.l.b16 %v1652
        %v1739 = vunpack.c.h.b16 %v1652
        %v1740 = vunpack.c.l.b16 %v1653
        %v1741 = vunpack.c.h.b16 %v1653
        %v1742 = vunpack.c.l.b16 %v1654
        %v1743 = vunpack.c.h.b16 %v1654
        %v1744 = vunpack.c.l.b16 %v1655
        %v1745 = vunpack.c.h.b16 %v1655
        %v1746 = vunpack.c.l.b16 %v1656
        %v1747 = vunpack.c.h.b16 %v1656
        %v1748 = vunpack.c.l.b16 %v1657
        %v1749 = vunpack.c.h.b16 %v1657
        %v1750 = vunpack.c.l.b16 %v1658
        %v1751 = vunpack.c.h.b16 %v1658
        %v1752 = vunpack.c.l.b16 %v1659
        %v1753 = vunpack.c.h.b16 %v1659
        %v1754 = vunpack.c.l.b16 %v1660
        %v1755 = vunpack.c.h.b16 %v1660
        %v1756 = vunpack.c.l.b16 %v1661
        %v1757 = vunpack.c.h.b16 %v1661
        %v1758 = vunpack.c.l.b16 %v1662
        %v1759 = vunpack.c.h.b16 %v1662
        %v1760 = vunpack.c.l.b16 %v1663
        %v1761 = vunpack.c.h.b16 %v1663
        %v1762 = vunpack.c.l.b16 %v1664
        %v1763 = vunpack.c.h.b16 %v1664
        %v1764 = vunpack.c.l.b16 %v1665
        %v1765 = vunpack.c.h.b16 %v1665
        %v1766 = vunpack.c.l.b16 %v1666
        %v1767 = vunpack.c.h.b16 %v1666
        %v1768 = vunpack.c.l.b16 %v1667
        %v1769 = vunpack.c.h.b16 %v1667
        %v1770 = vunpack.c.l.b16 %v1668
        %v1771 = vunpack.c.h.b16 %v1668
        %v1772 = vunpack.c.l.b16 %v1669
        %v1773 = vunpack.c.h.b16 %v1669
        %v1774 = vunpack.c.l.b16 %v1670
        %v1775 = vunpack.c.h.b16 %v1670
        %v1776 = vunpack.c.l.b16 %v1671
        %v1777 = vunpack.c.h.b16 %v1671
        %v1778 = vunpack.c.l.b16 %v1672
        %v1779 = vunpack.c.h.b16 %v1672
        %v1780 = vunpack.c.l.b16 %v1673
        %v1781 = vunpack.c.h.b16 %v1673
        %v1782 = vpack.c.b16 %v1720, %v1718
        %v1783 = vpack.c.b16 %v1721, %v1719
        %v1784 = vpack.c.b16 %v1724, %v1722
        %v1785 = vpack.c.b16 %v1725, %v1723
        %v1786 = vpack.c.b16 %v1728, %v1726
        %v1787 = vpack.c.b16 %v1729, %v1727
        %v1788 = vpack.c.b16 %v1732, %v1730
        %v1789 = vpack.c.b16 %v1733, %v1731
        %v1790 = vpack.c.b16 %v1736, %v1734
        %v1791 = vpack.c.b16 %v1737, %v1735
        %v1792 = vpack.c.b16 %v1740, %v1738
        %v1793 = vpack.c.b16 %v1741, %v1739
        %v1794 = vpack.c.b16 %v1744, %v1742
        %v1795 = vpack.c.b16 %v1745, %v1743
        %v1796 = vpack.c.b16 %v1748, %v1746
        %v1797 = vpack.c.b16 %v1749, %v1747
        %v1798 = vpack.c.b16 %v1752, %v1750
        %v1799 = vpack.c.b16 %v1753, %v1751
        %v1800 = vpack.c.b16 %v1756, %v1754
        %v1801 = vpack.c.b16 %v1757, %v1755
        %v1802 = vpack.c.b16 %v1760, %v1758
        %v1803 = vpack.c.b16 %v1761, %v1759
        %v1804 = vpack.c.b16 %v1764, %v1762
        %v1805 = vpack.c.b16 %v1765, %v1763
        %v1806 = vpack.c.b16 %v1768, %v1766
        %v1807 = vpack.c.b16 %v1769, %v1767
        %v1808 = vpack.c.b16 %v1772, %v1770
        %v1809 = vpack.c.b16 %v1773, %v1771
        %v1810 = vpack.c.b16 %v1776, %v1774
        %v1811 = vpack.c.b16 %v1777, %v1775
        %v1812 = vpack.c.b16 %v1780, %v1778
        %v1813 = vpack.c.b16 %v1781, %v1779
        %1846 = vmatprep.subr.bf16.mxu0 %v1783
        %1847 = vmatpush1.bf16.msra.mxu0 %v1782
        %1848 = vmatprep.subr.bf16.mxu0 %v1785
        %1849 = vmatpush1.bf16.msra.mxu0 %v1784
        %1850 = vmatprep.subr.bf16.mxu0 %v1787
        %1851 = vmatpush1.bf16.msra.mxu0 %v1786
        %1852 = vmatprep.subr.bf16.mxu0 %v1789
        %1853 = vmatpush1.bf16.msra.mxu0 %v1788
        %1854 = vmatprep.subr.bf16.mxu0 %v1791
        %1855 = vmatpush1.bf16.msra.mxu0 %v1790
        %1856 = vmatprep.subr.bf16.mxu0 %v1793
        %1857 = vmatpush1.bf16.msra.mxu0 %v1792
        %1858 = vmatprep.subr.bf16.mxu0 %v1795
        %1859 = vmatpush1.bf16.msra.mxu0 %v1794
        %1860 = vmatprep.subr.bf16.mxu0 %v1797
        %1861 = vmatpush1.bf16.msra.mxu0 %v1796
        %1862 = vmatprep.subr.bf16.mxu0 %v1799
        %1863 = vmatpush1.bf16.msra.mxu0 %v1798
        %1864 = vmatprep.subr.bf16.mxu0 %v1801
        %1865 = vmatpush1.bf16.msra.mxu0 %v1800
        %1866 = vmatprep.subr.bf16.mxu0 %v1803
        %1867 = vmatpush1.bf16.msra.mxu0 %v1802
        %1868 = vmatprep.subr.bf16.mxu0 %v1805
        %1869 = vmatpush1.bf16.msra.mxu0 %v1804
        %1870 = vmatprep.subr.bf16.mxu0 %v1807
        %1871 = vmatpush1.bf16.msra.mxu0 %v1806
        %1872 = vmatprep.subr.bf16.mxu0 %v1809
        %1873 = vmatpush1.bf16.msra.mxu0 %v1808
        %1874 = vmatprep.subr.bf16.mxu0 %v1811
        %1875 = vmatpush1.bf16.msra.mxu0 %v1810
        %1876 = vmatprep.subr.bf16.mxu0 %v1813
        %1877 = vmatpush1.bf16.msra.mxu0 %v1812
        %1878 = vmatprep.mubr.bf16.mxu0 %v1641
        %1879 = vmatmul.mubr.bf16.gmra.mrb[0].mxu0 %v1640
        %v1880 = vpop.f32.mrb[0].mxu0
        %v1881 = vadd.f32 %v1679, %v1880
        %v1882 = vpop.f32.mrb[0].mxu0
        %v1883 = vadd.f32 %v1683, %v1882
        %v1884 = vpop.f32.mrb[0].mxu0
        %v1885 = vadd.f32 %v1679, %v1884
        %v1886 = vpop.f32.mrb[0].mxu0
        %v1887 = vadd.f32 %v1683, %v1886
        %1888 = vdwg.mxu0
        %v1889 = vmul.f32 %v1881, 0.01
        %v1890 = vmul.f32 %v1883, 0.01
        %v1891 = vmul.f32 %v1885, 0.01
        %v1892 = vmul.f32 %v1887, 0.01
        %v1893 = vmax.f32 %v1881, %v1889
        %v1894 = vmax.f32 %v1883, %v1890
        %v1895 = vmax.f32 %v1885, %v1891
        %v1896 = vmax.f32 %v1887, %v1892
        %v1897 = vmax.f32 %v1893, %v1895
        %v1898 = vrot.slane %v1897, 4
        %v1899 = vmax.f32 %v1897, %v1898
        %v1900 = vrot.slane %v1899, 2
        %v1901 = vmax.f32 %v1899, %v1900
        %v1902 = vrot.slane %v1901, 1
        %v1903 = vmax.f32 %v1901, %v1902
        %v1904 = vmax.f32 %v1894, %v1896
        %v1905 = vrot.slane %v1904, 4
        %v1906 = vmax.f32 %v1904, %v1905
        %v1907 = vrot.slane %v1906, 2
        %v1908 = vmax.f32 %v1906, %v1907
        %v1909 = vrot.slane %v1908, 1
        %v1910 = vmax.f32 %v1908, %v1909
        %v1913 = vcombine.low %v1903, %v1910
        %v1915 = vunpack.c.l.s4 1966171168
        %v1916 = vunpack.c.0.s8 %v1915
        %v1917 = vlaneseq
        %v1918 = vshrl.u32 %v1917, 7
        %v1919 = vsub.s32 %v1916, %v1918
        %v1920 = vrot.slane %v1913, %v1919
        %v1922 = vunpack.c.l.s4 1966171168
        %v1923 = vunpack.c.0.s8 %v1922
        %v1924 = vlaneseq
        %v1925 = vshrl.u32 %v1924, 7
        %v1926 = vsub.s32 %v1923, %v1925
        %v1927 = vrot.slane %v1920, %v1926
        %v1929 = vlaneseq
        %vm1930 = vcmp.ge.s32.totalorder %v1929, 0
        %vm1931 = vcmp.lt.s32.totalorder %v1929, 256
        %vm1932 = vmand %vm1930, %vm1931
        %1933 = vst.msk [vmem:[%s618] sm:$0x3] %vm1932, %v1927
        %s1934 = sand.u32 %s322, 1
        %s1935 = scalar_lea.sflag [#allocation4], %s1934
        %s1936 = sand.u32 %s322, 1
        %s1937 = smul.addr %s1936, 2
        %s1938 = scalar_lea.vmem [#allocation23], %s1937
        // Predicated region
        $region125: #{pointnet_forward.1} parent=71 // pred_check
          %p1939 = pneg %p332
        $region126: #{pointnet_forward.1} parent=71 // pred_check_branch
          %1941 = sbr.rel (%p1939) target = $region128
        $region127: #{pointnet_forward.1} parent=71 // pred_region
          %s1943 = ssub.s32 32, 32
          %1944 = vsyncadd %s1935, %s1943
          %s1945 = smul.addr %s36, 2
          %s1946 = smul.addr %s1945, 16
          %s1947 = scalar_lea.hbm %s13, %s1946
          %s1949 = sshll.u32 %s1938, 4
          %s1950 = int_to_ptr.vmem [resolvable:$true] %s1949
          %1952 = dma.vmem_to_hbm [thread:$0]  %s1950, 32, %s1947, %s1935
        $region128: #{pointnet_forward.1} parent=71 // pred_fallthru
          _
      $region72: #{pointnet_forward.1} parent=5 // pred_fallthru
        _
      %p1953 = scmp.le.s32.totalorder 2, %s31
      // Predicated region
      $region129: #{pointnet_forward.1} parent=5 // pred_check
        %p1954 = pneg %p1953
      $region130: #{pointnet_forward.1} parent=5 // pred_check_branch
        %1956 = sbr.rel (%p1954) target = $region132
      $region131: #{pointnet_forward.1} parent=5 // pred_region
        %s1957 = ssub.s32 %s31, 2
        // Predicated region
        $region133: #{pointnet_forward.1} parent=131 // pred_check
          %p1958 = pneg %p338
        $region134: #{pointnet_forward.1} parent=131 // pred_check_branch
          %1960 = sbr.rel (%p1958) target = $region136
        $region135: #{pointnet_forward.1} parent=131 // pred_region
          %s1961 = sand.u32 %s323, 1
          %s1962 = scalar_lea.sflag [#allocation4], %s1961
          %s1963 = sand.u32 %s323, 1
          %s1964 = smul.addr %s1963, 2
          %s1965 = scalar_lea.vmem [#allocation23], %s1964
          %1966 = dma.done %s1962, 32
        $region136: #{pointnet_forward.1} parent=131 // pred_fallthru
          _
      $region132: #{pointnet_forward.1} parent=5 // pred_fallthru
        _
    $region6: #{pointnet_forward.1} parent=1 // loop_footer
      %s35 = sadd.s32 1, %s31
    $region7: #{pointnet_forward.1} parent=1 // loop_footer_branch
      %30 = sbr.rel target = $region3
    $region8: #{pointnet_forward.1} parent=1 // loop_exit
      _
    %1967 = vsyncpa [#allocation3], 1
    %s1968 = scalar_lea.sflag [#allocation3], 1
    %1969 = vsyncpa %s1968, 1
    %1970 = vsyncpa [#allocation6], 1
    %1971 = vsyncpa [#allocation9], 1
    %1972 = vsyncpa [#allocation12], 1
    %1973 = vsyncpa [#allocation15], 1
    %1974 = vsyncpa [#allocation18], 1
    %1975 = vsyncpa [#allocation21], 1
    %1976 = vsyncpa [#allocation4], 1
    %s1977 = scalar_lea.sflag [#allocation4], 1
    %1978 = vsyncpa %s1977, 1

</llo_original>
